<compile_context>
chip_gen: v6e
topology: v6e:2x2x1
jax: 0.10.0
libtpu: 0.0.40
codegen_flags: <defaults>
</compile_context>

<pallas_src>
import functools
import math

import jax
import jax.numpy as jnp
from jax import lax
from jax.experimental import pallas as pl
from jax.experimental.pallas import tpu as pltpu

EPS_NORM = 1e-12   # torch.nn.functional.normalize default eps
EPS_COS = 1e-8     # torch.cosine_similarity default eps

_MIB = 1024 * 1024
_VMEM = pl.BlockSpec(memory_space=pltpu.MemorySpace.VMEM)


# ----------------------------------------------------------------------------
# Device queries (per-generation VMEM budget / megacore detection)
# ----------------------------------------------------------------------------
def _device_kind():
    try:
        return jax.devices()[0].device_kind.lower()
    except Exception:
        return ""


def _vmem_capacity_bytes():
    try:
        return int(pltpu.get_tpu_info().vmem_capacity_bytes)
    except Exception:
        kind = _device_kind()
        if "v7" in kind or "7x" in kind:
            return 64 * _MIB
        return 128 * _MIB


def _num_tensorcores():
    kind = _device_kind()
    if any(tag in kind for tag in ("v4", "v5p", "v7", "7x")):
        return 2
    return 1


def _vmem_budget_bytes():
    # Half the physical VMEM: ~64 MiB on v5e/v6e (128 MiB parts), ~32 MiB on
    # v7x (64 MiB / TC).  Leaves headroom for compiler scratch.
    return _vmem_capacity_bytes() // 2


def _vmem_limit_bytes(estimate):
    cap = _vmem_capacity_bytes()
    return int(min(0.9 * cap, max(32 * _MIB, estimate + 8 * _MIB)))


# ----------------------------------------------------------------------------
# Tiling / VMEM accounting
# ----------------------------------------------------------------------------
def _round_up(x, m):
    return -(-x // m) * m


def _tile_bytes(rows, cols, itemsize):
    return _round_up(max(rows, 1), 8) * _round_up(max(cols, 1), 128) * itemsize


def _encoder_vmem_bytes(bm, ts, H, vocab, tok_bufs=2, inv_bufs=2, out_bufs=2):
    """Conservative VMEM footprint of the encoder at tile (bm, ts)."""
    tok = _tile_bytes(bm, ts, 4) * tok_bufs              # int32 token ids tile
    table = _tile_bytes(vocab, H, 4) * inv_bufs          # resident f32 tok_table
    w = _tile_bytes(H, H, 2) * inv_bufs                  # resident bf16 W
    bias = _tile_bytes(1, H, 4) * inv_bufs               # resident f32 bias
    out = _tile_bytes(bm, H, 4) * out_bufs               # normalized sentences
    acc = _tile_bytes(bm, H, 4)                          # f32 accumulator scratch
    onehot = _round_up(bm, 8) * ts * _round_up(vocab, 128) * 4  # gather work set
    return tok + table + w + bias + out + acc + onehot


def _divisor_blocks(dim, unit):
    """Legal block sizes along one axis: the full dim plus multiples of `unit`
    that divide it (Mosaic (8,128) block-shape rule)."""
    opts = {dim}
    k = unit
    while k < dim:
        if dim % k == 0:
            opts.add(k)
        k += unit
    return sorted(opts)


def _pick_encoder_tiles(B, S, H, vocab, budget, want_batch_blocks):
    """Largest (bm, ts) fitting `budget`; prefer >= want_batch_blocks batch
    blocks (2-TC megacore sharding), then the largest sequence tile."""
    best_key, best = None, None
    for bm in _divisor_blocks(B, 8):
        for ts in _divisor_blocks(S, 128):
            est = _encoder_vmem_bytes(bm, ts, H, vocab)
            if est <= budget:
                key = (True, min(B // bm, want_batch_blocks), ts, bm)
            else:
                key = (False, -est)
            if best_key is None or key > best_key:
                best_key, best = key, (bm, ts, est)
    return best


# ----------------------------------------------------------------------------
# In-kernel building blocks
# ----------------------------------------------------------------------------
def _accumulate_token_counts(tok_ref, table_ref, acc_ref, s_idx, vocab):
    """acc += token_counts(tok_tile) @ tok_table  (== sum of embedding rows).

    Replaces the wrapper-side (B, S, H) gather: only (bm, ts) int32 ids are
    streamed from HBM; tok_table stays resident in VMEM.
    TODO(synk): for BERT-scale vocab this one-hot counts matmul should be
                replaced by a scalar-prefetch + DMA row gather (pl.ANY).
    """

    @pl.when(s_idx == 0)
    def _():
        acc_ref[...] = jnp.zeros_like(acc_ref)

    tok = tok_ref[...]                                           # (bm, ts) int32
    vocab_ids = lax.broadcasted_iota(jnp.int32, (1, 1, vocab), 2)
    onehot = (tok[:, :, None] == vocab_ids).astype(jnp.float32)  # (bm, ts, V)
    counts = jnp.sum(onehot, axis=1)                             # (bm, V) f32
    acc_ref[...] += jnp.dot(counts, table_ref[...],
                            preferred_element_type=jnp.float32)


def _finish_sentence(acc, w_bf16, b, inv_seq_len):
    """Mean-pool -> dense (bf16 MXU, f32 acc) -> tanh -> F.normalize(., 2, -1)."""
    pooled = (acc * inv_seq_len).astype(jnp.bfloat16)
    h = jnp.dot(pooled, w_bf16, preferred_element_type=jnp.float32)
    s = jnp.tanh(h + b)
    inv_nrm = lax.rsqrt(jnp.maximum(jnp.sum(s * s, axis=-1, keepdims=True),
                                    EPS_NORM * EPS_NORM))
    return s * inv_nrm


def _relation_loss(e, r_raw, bs):
    """TransH/TransD-style relation loss on normalized embeddings e=(2bs, H)."""
    r = r_raw * lax.rsqrt(jnp.maximum(
        jnp.sum(r_raw * r_raw, axis=-1, keepdims=True), EPS_NORM * EPS_NORM))

    h = e[:bs]
    t = e[bs:]
    # transfer(e, p) = e - <e, p> * p
    h = h - jnp.sum(h * r, axis=-1, keepdims=True) * r
    t = t - jnp.sum(t * r, axis=-1, keepdims=True) * r

    # Squared norms computed once; their rolled (bs, 1) columns are reused in
    # all three cosines (no redundant lane reductions).
    hh = jnp.sum(h * h, axis=-1, keepdims=True)
    tt = jnp.sum(t * t, axis=-1, keepdims=True)
    ht = jnp.sum(h * t, axis=-1, keepdims=True)

    # Cyclic negatives (torch.cat((x[1:], x[:1]), 0)); the total loss is
    # invariant to the roll direction (neg1/neg2 swap).
    h_neg = pltpu.roll(h, bs - 1, 0)
    t_neg = pltpu.roll(t, bs - 1, 0)
    hh_neg = pltpu.roll(hh, bs - 1, 0)
    tt_neg = pltpu.roll(tt, bs - 1, 0)

    ht_n1 = jnp.sum(h * t_neg, axis=-1, keepdims=True)
    ht_n2 = jnp.sum(h_neg * t, axis=-1, keepdims=True)

    def abs_cos(num, n_a, n_b):
        return jnp.abs(num) * lax.rsqrt(jnp.maximum(n_a * n_b,
                                                    EPS_COS * EPS_COS))

    loss_pos = (1.0 - abs_cos(ht, hh, tt)) ** 2                  # (bs, 1)
    loss_neg1 = abs_cos(ht_n1, hh, tt_neg) ** 2
    loss_neg2 = abs_cos(ht_n2, hh_neg, tt) ** 2
    per_row = (2.0 * loss_pos + loss_neg1 + loss_neg2) * 0.25
    return jnp.sum(per_row, keepdims=True)                       # (1, 1)


# ----------------------------------------------------------------------------
# Kernels
# ----------------------------------------------------------------------------
def _encoder_kernel(tok_ref, table_ref, w_ref, b_ref, out_ref, acc_ref, *,
                    vocab, inv_seq_len):
    s_idx = pl.program_id(1)
    _accumulate_token_counts(tok_ref, table_ref, acc_ref, s_idx, vocab)

    @pl.when(s_idx == pl.num_programs(1) - 1)
    def _():
        out_ref[...] = _finish_sentence(acc_ref[...], w_ref[...], b_ref[...],
                                        inv_seq_len).astype(out_ref.dtype)


def _encoder_loss_kernel(tok_ref, table_ref, w_ref, b_ref, r_ref,
                         loss_ref, acc_ref, *, vocab, inv_seq_len, bs):
    s_idx = pl.program_id(0)
    _accumulate_token_counts(tok_ref, table_ref, acc_ref, s_idx, vocab)

    @pl.when(s_idx == pl.num_programs(0) - 1)
    def _():
        e = _finish_sentence(acc_ref[...], w_ref[...], b_ref[...], inv_seq_len)
        loss_ref[...] = _relation_loss(e, r_ref[...], bs)


def _dt_loss_kernel(e_ref, r_ref, out_ref, *, bs):
    out_ref[...] = _relation_loss(e_ref[...], r_ref[...], bs)


# ----------------------------------------------------------------------------
# pallas_call builders
# ----------------------------------------------------------------------------
def _mk_invariant_spec(single_buffer):
    if single_buffer:
        return lambda shape, index_map: pl.BlockSpec(
            shape, index_map, pipeline_mode=pl.Buffered(1))
    return lambda shape, index_map: pl.BlockSpec(shape, index_map)


def _encode_pallas(token, table, w_bf16, b, bm, ts, vmem_limit, single_buffer):
    B, S = token.shape
    vocab, H = table.shape
    inv = _mk_invariant_spec(single_buffer)
    return pl.pallas_call(
        functools.partial(_encoder_kernel, vocab=vocab, inv_seq_len=1.0 / S),
        out_shape=jax.ShapeDtypeStruct((B, H), jnp.float32),
        grid_spec=pltpu.PrefetchScalarGridSpec(
            num_scalar_prefetch=0,
            grid=(B // bm, S // ts),
            in_specs=[
                pl.BlockSpec((bm, ts), lambda i, s: (i, s)),   # token ids stream
                inv((vocab, H), lambda i, s: (0, 0)),          # tok_table resident
                inv((H, H), lambda i, s: (0, 0)),              # W (bf16) resident
                inv((1, H), lambda i, s: (0, 0)),              # bias resident
            ],
            out_specs=pl.BlockSpec((bm, H), lambda i, s: (i, 0)),
            scratch_shapes=[pltpu.VMEM((bm, H), jnp.float32)],
        ),
        compiler_params=pltpu.CompilerParams(
            dimension_semantics=("parallel", "arbitrary"),
            vmem_limit_bytes=vmem_limit),
    )(token, table, w_bf16, b)


def _encode_loss_pallas(token, table, w_bf16, b, r_rows, bs, ts, vmem_limit,
                        single_buffer):
    B, S = token.shape
    vocab, H = table.shape
    inv = _mk_invariant_spec(single_buffer)
    out = pl.pallas_call(
        functools.partial(_encoder_loss_kernel, vocab=vocab,
                          inv_seq_len=1.0 / S, bs=bs),
        out_shape=jax.ShapeDtypeStruct((1, 1), jnp.float32),
        grid_spec=pltpu.PrefetchScalarGridSpec(
            num_scalar_prefetch=0,
            grid=(S // ts,),
            in_specs=[
                pl.BlockSpec((B, ts), lambda s: (0, s)),       # token ids stream
                inv((vocab, H), lambda s: (0, 0)),             # tok_table resident
                inv((H, H), lambda s: (0, 0)),                 # W (bf16) resident
                inv((1, H), lambda s: (0, 0)),                 # bias resident
                inv((bs, H), lambda s: (0, 0)),                # gathered R rows
            ],
            out_specs=pl.BlockSpec((1, 1), lambda s: (0, 0)),
            scratch_shapes=[pltpu.VMEM((B, H), jnp.float32)],
        ),
        compiler_params=pltpu.CompilerParams(
            dimension_semantics=("arbitrary",),
            vmem_limit_bytes=vmem_limit),
    )(token, table, w_bf16, b, r_rows)
    return out[0, 0]


# ----------------------------------------------------------------------------
# Public wrappers (single-buffer invariants, with a no-pipeline_mode retry)
# ----------------------------------------------------------------------------
def bert_encode_normalized(token, tok_table, w_bf16, b):
    B, S = token.shape
    vocab, H = tok_table.shape
    want_blocks = 2 if _num_tensorcores() >= 2 else 1
    bm, ts, est = _pick_encoder_tiles(B, S, H, vocab,
                                      _vmem_budget_bytes(), want_blocks)
    vmem_limit = _vmem_limit_bytes(est)
    last_err = None
    for single_buffer in (True, False):
        try:
            return _encode_pallas(token, tok_table, w_bf16, b, bm, ts,
                                  vmem_limit, single_buffer)
        except Exception as err:            # retry without pipeline_mode
            last_err = err
    raise last_err


def encode_and_relation_loss(token, tok_table, w_bf16, b, r_rows, bs, ts,
                             vmem_limit):
    last_err = None
    for single_buffer in (True, False):
        try:
            return _encode_loss_pallas(token, tok_table, w_bf16, b, r_rows, bs,
                                       ts, vmem_limit, single_buffer)
        except Exception as err:            # retry without pipeline_mode
            last_err = err
    raise last_err


def dt_loss(e_norm, r_rows, bs):
    out = pl.pallas_call(
        functools.partial(_dt_loss_kernel, bs=bs),
        out_shape=jax.ShapeDtypeStruct((1, 1), jnp.float32),
        in_specs=[_VMEM, _VMEM],
        out_specs=_VMEM,
    )(e_norm, r_rows)
    return out[0, 0]


# ----------------------------------------------------------------------------
# DTModel forward
# ----------------------------------------------------------------------------
def dt_model_forward(params, token, bs=None, r_idx=None):
    """Mirrors DTModel.forward: inference (bs=None) returns normalized sentence
    embeddings; training returns the scalar relation loss."""
    tok_table = params["tok_table"]
    w_bf16 = params["W"].astype(jnp.bfloat16)   # cast once -> bf16 MXU operand
    b = params["b"]

    if bs is None:
        return bert_encode_normalized(token, tok_table, w_bf16, b)

    B, S = token.shape
    vocab, H = tok_table.shape
    assert B == 2 * bs, "training batch must hold bs heads followed by bs tails"
    r_rows = jnp.take(params["R_table"], r_idx, axis=0)   # tiny (bs, H) gather

    # Fused path: whole batch in one block -> single pallas_call, no (2bs, H)
    # HBM round-trip between encoder and loss.
    budget = _vmem_budget_bytes()
    fused_ts = fused_est = None
    for ts in sorted(_divisor_blocks(S, 128), reverse=True):
        est = _encoder_vmem_bytes(B, ts, H, vocab) + _tile_bytes(bs, H, 4) * 2
        if est <= budget:
            fused_ts, fused_est = ts, est
            break
    if fused_ts is not None:
        return encode_and_relation_loss(token, tok_table, w_bf16, b, r_rows, bs,
                                        fused_ts, _vmem_limit_bytes(fused_est))

    # Fallback: batch too large for one block -> tiled encoder + loss kernel.
    e_norm = bert_encode_normalized(token, tok_table, w_bf16, b)
    return dt_loss(e_norm, r_rows, bs)


# ----------------------------------------------------------------------------
# Pure-JAX f32 reference (mirrors the PyTorch semantics) for correctness.
# ----------------------------------------------------------------------------
def _ref_forward(params, token, bs, r_idx):
    tok_emb = jnp.take(params["tok_table"], token, axis=0)
    pooled = jnp.mean(tok_emb, axis=1)
    sent = jnp.tanh(pooled @ params["W"] + params["b"])

    def l2n(x):
        return x / jnp.maximum(jnp.linalg.norm(x, axis=-1, keepdims=True), EPS_NORM)

    e = l2n(sent)
    r = l2n(jnp.take(params["R_table"], r_idx, axis=0))

    def transfer(x):
        return x - jnp.sum(x * r, axis=-1, keepdims=True) * r

    h = transfer(e[:bs])
    t = transfer(e[bs:])
    h_neg = jnp.concatenate([h[1:], h[:1]], axis=0)
    t_neg = jnp.concatenate([t[1:], t[:1]], axis=0)

    def cos(a, b):
        w12 = jnp.sum(a * b, -1)
        w1 = jnp.sum(a * a, -1)
        w2 = jnp.sum(b * b, -1)
        return w12 / jnp.sqrt(jnp.maximum(w1 * w2, EPS_COS * EPS_COS))

    lp = (1.0 - jnp.abs(cos(h, t))) ** 2
    ln1 = jnp.abs(cos(h, t_neg)) ** 2
    ln2 = jnp.abs(cos(h_neg, t)) ** 2
    loss = jnp.sum((2.0 * lp + ln1 + ln2) / 4.0)
    return e, loss


if __name__ == "__main__":
    # Small shapes; H is a multiple of 128 so lanes are fully dense.
    bs, seq, H, vocab, n_R = 8, 8, 128, 48, 6
    B = 2 * bs

    key = jax.random.PRNGKey(0)
    k1, k2, k3, k4, k5, k6 = jax.random.split(key, 6)

    K = math.sqrt(6.0 / H)  # R_table uniform init range, as in the module
    params = {
        "tok_table": jax.random.normal(k1, (vocab, H), jnp.float32) * 0.02,
        "W": jax.random.normal(k2, (H, H), jnp.float32) / math.sqrt(H),
        "b": jax.random.normal(k3, (1, H), jnp.float32) * 0.01,
        "R_table": jax.random.uniform(k4, (n_R, H), jnp.float32, minval=-K, maxval=K),
    }

    token = jax.random.randint(k5, (B, seq), 0, vocab, dtype=jnp.int32)
    r_idx = jax.random.randint(k6, (bs,), 0, n_R, dtype=jnp.int32)

    # Inference branch (bs=None): normalized sentence embeddings.
    sent_norm = jax.block_until_ready(dt_model_forward(params, token))

    # Training branch: fused encoder + relation loss (single pallas_call).
    loss = jax.block_until_ready(dt_model_forward(params, token, bs=bs, r_idx=r_idx))

    # Also exercise the standalone loss kernel (fallback path for large B).
    r_rows = jnp.take(params["R_table"], r_idx, axis=0)
    loss_unfused = jax.block_until_ready(dt_loss(sent_norm, r_rows, bs))

    # Correctness against the pure-JAX f32 reference (tolerances allow the
    # bf16 MXU operands with f32 accumulation in the encoder epilogue).
    ref_sent, ref_loss = _ref_forward(params, token, bs, r_idx)
    assert jnp.allclose(sent_norm, ref_sent, rtol=5e-3, atol=5e-3), "sentence mismatch"
    assert abs(float(loss) - float(ref_loss)) < 5e-2, (float(loss), float(ref_loss))
    assert abs(float(loss_unfused) - float(ref_loss)) < 5e-2, (
        float(loss_unfused), float(ref_loss))

    print("KERNEL_OK")
</pallas_src>

<mosaic_0001>
module attributes {stable_mosaic.version = 11 : i64} {
  func.func @_encoder_kernel(%arg0: i32, %arg1: i32, %arg2: memref<16x8xi32, #tpu.memory_space<vmem>>, %arg3: memref<48x128xf32, #tpu.memory_space<vmem>>, %arg4: memref<128x128xbf16, #tpu.memory_space<vmem>>, %arg5: memref<1x128xf32, #tpu.memory_space<vmem>>, %arg6: memref<16x128xf32, #tpu.memory_space<vmem>>, %arg7: memref<16x128xf32, #tpu.memory_space<vmem>>) attributes {dimension_semantics = [#tpu.dimension_semantics<parallel>, #tpu.dimension_semantics<arbitrary>], iteration_bounds = array<i64: 1, 1>, scalar_prefetch = 0 : i64, scratch_operands = 1 : i64, tpu.core_type = #tpu.core_type<tc>, window_params = [{transform_indices = @transform_0, window_bounds = array<i64: 16, 8>}, {pipeline_mode = #tpu.pipeline_mode<synchronous>, transform_indices = @transform_1, window_bounds = array<i64: 48, 128>}, {pipeline_mode = #tpu.pipeline_mode<synchronous>, transform_indices = @transform_2, window_bounds = array<i64: 128, 128>}, {pipeline_mode = #tpu.pipeline_mode<synchronous>, transform_indices = @transform_3, window_bounds = array<i64: 1, 128>}, {transform_indices = @transform_4, window_bounds = array<i64: 16, 128>}]} {
    %c0_i32 = arith.constant 0 : i32
    %0 = arith.cmpi eq, %arg1, %c0_i32 : i32
    %1 = arith.extui %0 : i1 to i32
    %c0_i32_0 = arith.constant 0 : i32
    %2 = arith.cmpi ne, %1, %c0_i32_0 : i32
    scf.if %2 {
      %cst_11 = arith.constant 0.000000e+00 : f32
      %20 = vector.broadcast %cst_11 : f32 to vector<16x128xf32>
      %c0_12 = arith.constant 0 : index
      %c0_13 = arith.constant 0 : index
      %21 = vector.load %arg7[%c0_12, %c0_13] : memref<16x128xf32, #tpu.memory_space<vmem>>, vector<16x128xf32>
      tpu.vector_store %arg7[%c0_12, %c0_13], %20 {strides = array<i32>} : memref<16x128xf32, #tpu.memory_space<vmem>>, vector<16x128xf32>,
    } else {
    }
    %c0 = arith.constant 0 : index
    %c0_1 = arith.constant 0 : index
    %3 = vector.load %arg2[%c0, %c0_1] : memref<16x8xi32, #tpu.memory_space<vmem>>, vector<16x8xi32>
    %4 = tpu.iota {dimensions = array<i32: 2>} : vector<1x1x48xi32>
    %5 = vector.shape_cast %3 : vector<16x8xi32> to vector<16x8x1xi32>
    %6 = vector.broadcast %5 : vector<16x8x1xi32> to vector<16x8x48xi32>
    %7 = vector.broadcast %4 : vector<1x1x48xi32> to vector<16x8x48xi32>
    %8 = arith.cmpi eq, %6, %7 : vector<16x8x48xi32>
    %9 = arith.extui %8 : vector<16x8x48xi1> to vector<16x8x48xi32>
    %10 = arith.sitofp %9 : vector<16x8x48xi32> to vector<16x8x48xf32>
    %cst = arith.constant dense<0.000000e+00> : vector<16x48xf32>
    %11 = vector.multi_reduction <add>, %10, %cst [1] : vector<16x8x48xf32> to vector<16x48xf32>
    %c0_2 = arith.constant 0 : index
    %c0_3 = arith.constant 0 : index
    %12 = vector.load %arg7[%c0_2, %c0_3] : memref<16x128xf32, #tpu.memory_space<vmem>>, vector<16x128xf32>
    %c0_4 = arith.constant 0 : index
    %c0_5 = arith.constant 0 : index
    %13 = vector.load %arg3[%c0_4, %c0_5] : memref<48x128xf32, #tpu.memory_space<vmem>>, vector<48x128xf32>
    %cst_6 = arith.constant dense<0.000000e+00> : vector<16x128xf32>
    %14 = tpu.matmul %11, %13, %cst_6 {dimension_numbers = #tpu.dot_dimension_numbers<[1], [0], [0], [1], [0, 0, 1, 1], [], []>} : vector<16x48xf32>, vector<48x128xf32>, vector<16x128xf32> -> vector<16x128xf32>
    %15 = arith.addf %12, %14 : vector<16x128xf32>
    %c0_7 = arith.constant 0 : index
    %c0_8 = arith.constant 0 : index
    %16 = vector.load %arg7[%c0_7, %c0_8] : memref<16x128xf32, #tpu.memory_space<vmem>>, vector<16x128xf32>
    tpu.vector_store %arg7[%c0_7, %c0_8], %15 {strides = array<i32>} : memref<16x128xf32, #tpu.memory_space<vmem>>, vector<16x128xf32>,
    %c0_i32_9 = arith.constant 0 : i32
    %17 = arith.cmpi eq, %arg1, %c0_i32_9 : i32
    %18 = arith.extui %17 : i1 to i32
    %c0_i32_10 = arith.constant 0 : i32
    %19 = arith.cmpi ne, %18, %c0_i32_10 : i32
    scf.if %19 {
      %c0_11 = arith.constant 0 : index
      %c0_12 = arith.constant 0 : index
      %20 = vector.load %arg7[%c0_11, %c0_12] : memref<16x128xf32, #tpu.memory_space<vmem>>, vector<16x128xf32>
      %c0_13 = arith.constant 0 : index
      %c0_14 = arith.constant 0 : index
      %21 = vector.load %arg4[%c0_13, %c0_14] : memref<128x128xbf16, #tpu.memory_space<vmem>>, vector<128x128xbf16>
      %c0_15 = arith.constant 0 : index
      %c0_16 = arith.constant 0 : index
      %22 = vector.load %arg5[%c0_15, %c0_16] : memref<1x128xf32, #tpu.memory_space<vmem>>, vector<1x128xf32>
      %cst_17 = arith.constant 1.250000e-01 : f32
      %23 = vector.broadcast %cst_17 : f32 to vector<16x128xf32>
      %24 = arith.mulf %20, %23 : vector<16x128xf32>
      %25 = arith.truncf %24 : vector<16x128xf32> to vector<16x128xbf16>
      %cst_18 = arith.constant dense<0.000000e+00> : vector<16x128xf32>
      %26 = tpu.matmul %25, %21, %cst_18 {dimension_numbers = #tpu.dot_dimension_numbers<[1], [0], [0], [1], [0, 0, 1, 1], [], []>} : vector<16x128xbf16>, vector<128x128xbf16>, vector<16x128xf32> -> vector<16x128xf32>
      %27 = vector.broadcast %22 : vector<1x128xf32> to vector<16x128xf32>
      %28 = arith.addf %26, %27 : vector<16x128xf32>
      %29 = math.tanh %28 : vector<16x128xf32>
      %30 = arith.mulf %29, %29 : vector<16x128xf32>
      %cst_19 = arith.constant dense<0.000000e+00> : vector<16xf32>
      %31 = vector.multi_reduction <add>, %30, %cst_19 [1] : vector<16x128xf32> to vector<16xf32>
      %32 = vector.shape_cast %31 : vector<16xf32> to vector<16x1xf32>
      %cst_20 = arith.constant 1.000000e-24 : f32
      %33 = vector.broadcast %cst_20 : f32 to vector<16x1xf32>
      %34 = arith.maximumf %32, %33 : vector<16x1xf32>
      %35 = math.rsqrt %34 : vector<16x1xf32>
      %36 = vector.broadcast %35 : vector<16x1xf32> to vector<16x128xf32>
      %37 = arith.mulf %29, %36 : vector<16x128xf32>
      %c0_21 = arith.constant 0 : index
      %c0_22 = arith.constant 0 : index
      %38 = vector.load %arg6[%c0_21, %c0_22] : memref<16x128xf32, #tpu.memory_space<vmem>>, vector<16x128xf32>
      tpu.vector_store %arg6[%c0_21, %c0_22], %37 {strides = array<i32>} : memref<16x128xf32, #tpu.memory_space<vmem>>, vector<16x128xf32>,
    } else {
    }
    return
  }
  func.func @transform_0(%arg0: i32, %arg1: i32) -> (i32, i32) {
    %c0_i32 = arith.constant 0 : i32
    return %arg0, %arg1 : i32, i32
  }
  func.func @transform_1(%arg0: i32, %arg1: i32) -> (i32, i32) {
    %c0_i32 = arith.constant 0 : i32
    %c0_i32_0 = arith.constant 0 : i32
    %c0_i32_1 = arith.constant 0 : i32
    return %c0_i32, %c0_i32_0 : i32, i32
  }
  func.func @transform_2(%arg0: i32, %arg1: i32) -> (i32, i32) {
    %c0_i32 = arith.constant 0 : i32
    %c0_i32_0 = arith.constant 0 : i32
    %c0_i32_1 = arith.constant 0 : i32
    return %c0_i32, %c0_i32_0 : i32, i32
  }
  func.func @transform_3(%arg0: i32, %arg1: i32) -> (i32, i32) {
    %c0_i32 = arith.constant 0 : i32
    %c0_i32_0 = arith.constant 0 : i32
    %c0_i32_1 = arith.constant 0 : i32
    return %c0_i32, %c0_i32_0 : i32, i32
  }
  func.func @transform_4(%arg0: i32, %arg1: i32) -> (i32, i32) {
    %c0_i32 = arith.constant 0 : i32
    %c0_i32_0 = arith.constant 0 : i32
    return %arg0, %c0_i32 : i32, i32
  }
}

module attributes {stable_mosaic.version = 11 : i64} {
  func.func @_encoder_kernel(%arg0: i32, %arg1: i32, %arg2: memref<16x8xi32, #tpu.memory_space<vmem>>, %arg3: memref<48x128xf32, #tpu.memory_space<vmem>>, %arg4: memref<128x128xbf16, #tpu.memory_space<vmem>>, %arg5: memref<1x128xf32, #tpu.memory_space<vmem>>, %arg6: memref<16x128xf32, #tpu.memory_space<vmem>>, %arg7: memref<16x128xf32, #tpu.memory_space<vmem>>) attributes {dimension_semantics = [#tpu.dimension_semantics<parallel>, #tpu.dimension_semantics<arbitrary>], iteration_bounds = array<i64: 1, 1>, scalar_prefetch = 0 : i64, scratch_operands = 1 : i64, tpu.core_type = #tpu.core_type<tc>, window_params = [{transform_indices = @transform_0, window_bounds = array<i64: 16, 8>}, {pipeline_mode = #tpu.pipeline_mode<synchronous>, transform_indices = @transform_1, window_bounds = array<i64: 48, 128>}, {pipeline_mode = #tpu.pipeline_mode<synchronous>, transform_indices = @transform_2, window_bounds = array<i64: 128, 128>}, {pipeline_mode = #tpu.pipeline_mode<synchronous>, transform_indices = @transform_3, window_bounds = array<i64: 1, 128>}, {transform_indices = @transform_4, window_bounds = array<i64: 16, 128>}]} {
    %c0_i32 = arith.constant 0 : i32
    %0 = arith.cmpi eq, %arg1, %c0_i32 : i32
    %1 = arith.extui %0 : i1 to i32
    %c0_i32_0 = arith.constant 0 : i32
    %2 = arith.cmpi ne, %1, %c0_i32_0 : i32
    scf.if %2 {
      %cst_11 = arith.constant 0.000000e+00 : f32
      %20 = vector.broadcast %cst_11 : f32 to vector<16x128xf32>
      %c0_12 = arith.constant 0 : index
      %c0_13 = arith.constant 0 : index
      %21 = vector.load %arg7[%c0_12, %c0_13] : memref<16x128xf32, #tpu.memory_space<vmem>>, vector<16x128xf32>
      tpu.vector_store %arg7[%c0_12, %c0_13], %20 {strides = array<i32>} : memref<16x128xf32, #tpu.memory_space<vmem>>, vector<16x128xf32>,
    } else {
    }
    %c0 = arith.constant 0 : index
    %c0_1 = arith.constant 0 : index
    %3 = vector.load %arg2[%c0, %c0_1] : memref<16x8xi32, #tpu.memory_space<vmem>>, vector<16x8xi32>
    %4 = tpu.iota {dimensions = array<i32: 2>} : vector<1x1x48xi32>
    %5 = vector.shape_cast %3 : vector<16x8xi32> to vector<16x8x1xi32>
    %6 = vector.broadcast %5 : vector<16x8x1xi32> to vector<16x8x48xi32>
    %7 = vector.broadcast %4 : vector<1x1x48xi32> to vector<16x8x48xi32>
    %8 = arith.cmpi eq, %6, %7 : vector<16x8x48xi32>
    %9 = arith.extui %8 : vector<16x8x48xi1> to vector<16x8x48xi32>
    %10 = arith.sitofp %9 : vector<16x8x48xi32> to vector<16x8x48xf32>
    %cst = arith.constant dense<0.000000e+00> : vector<16x48xf32>
    %11 = vector.multi_reduction <add>, %10, %cst [1] : vector<16x8x48xf32> to vector<16x48xf32>
    %c0_2 = arith.constant 0 : index
    %c0_3 = arith.constant 0 : index
    %12 = vector.load %arg7[%c0_2, %c0_3] : memref<16x128xf32, #tpu.memory_space<vmem>>, vector<16x128xf32>
    %c0_4 = arith.constant 0 : index
    %c0_5 = arith.constant 0 : index
    %13 = vector.load %arg3[%c0_4, %c0_5] : memref<48x128xf32, #tpu.memory_space<vmem>>, vector<48x128xf32>
    %cst_6 = arith.constant dense<0.000000e+00> : vector<16x128xf32>
    %14 = tpu.matmul %11, %13, %cst_6 {dimension_numbers = #tpu.dot_dimension_numbers<[1], [0], [0], [1], [0, 0, 1, 1], [], []>} : vector<16x48xf32>, vector<48x128xf32>, vector<16x128xf32> -> vector<16x128xf32>
    %15 = arith.addf %12, %14 : vector<16x128xf32>
    %c0_7 = arith.constant 0 : index
    %c0_8 = arith.constant 0 : index
    %16 = vector.load %arg7[%c0_7, %c0_8] : memref<16x128xf32, #tpu.memory_space<vmem>>, vector<16x128xf32>
    tpu.vector_store %arg7[%c0_7, %c0_8], %15 {strides = array<i32>} : memref<16x128xf32, #tpu.memory_space<vmem>>, vector<16x128xf32>,
    %c0_i32_9 = arith.constant 0 : i32
    %17 = arith.cmpi eq, %arg1, %c0_i32_9 : i32
    %18 = arith.extui %17 : i1 to i32
    %c0_i32_10 = arith.constant 0 : i32
    %19 = arith.cmpi ne, %18, %c0_i32_10 : i32
    scf.if %19 {
      %c0_11 = arith.constant 0 : index
      %c0_12 = arith.constant 0 : index
      %20 = vector.load %arg7[%c0_11, %c0_12] : memref<16x128xf32, #tpu.memory_space<vmem>>, vector<16x128xf32>
      %c0_13 = arith.constant 0 : index
      %c0_14 = arith.constant 0 : index
      %21 = vector.load %arg4[%c0_13, %c0_14] : memref<128x128xbf16, #tpu.memory_space<vmem>>, vector<128x128xbf16>
      %c0_15 = arith.constant 0 : index
      %c0_16 = arith.constant 0 : index
      %22 = vector.load %arg5[%c0_15, %c0_16] : memref<1x128xf32, #tpu.memory_space<vmem>>, vector<1x128xf32>
      %cst_17 = arith.constant 1.250000e-01 : f32
      %23 = vector.broadcast %cst_17 : f32 to vector<16x128xf32>
      %24 = arith.mulf %20, %23 : vector<16x128xf32>
      %25 = arith.truncf %24 : vector<16x128xf32> to vector<16x128xbf16>
      %cst_18 = arith.constant dense<0.000000e+00> : vector<16x128xf32>
      %26 = tpu.matmul %25, %21, %cst_18 {dimension_numbers = #tpu.dot_dimension_numbers<[1], [0], [0], [1], [0, 0, 1, 1], [], []>} : vector<16x128xbf16>, vector<128x128xbf16>, vector<16x128xf32> -> vector<16x128xf32>
      %27 = vector.broadcast %22 : vector<1x128xf32> to vector<16x128xf32>
      %28 = arith.addf %26, %27 : vector<16x128xf32>
      %29 = math.tanh %28 : vector<16x128xf32>
      %30 = arith.mulf %29, %29 : vector<16x128xf32>
      %cst_19 = arith.constant dense<0.000000e+00> : vector<16xf32>
      %31 = vector.multi_reduction <add>, %30, %cst_19 [1] : vector<16x128xf32> to vector<16xf32>
      %32 = vector.shape_cast %31 : vector<16xf32> to vector<16x1xf32>
      %cst_20 = arith.constant 1.000000e-24 : f32
      %33 = vector.broadcast %cst_20 : f32 to vector<16x1xf32>
      %34 = arith.maximumf %32, %33 : vector<16x1xf32>
      %35 = math.rsqrt %34 : vector<16x1xf32>
      %36 = vector.broadcast %35 : vector<16x1xf32> to vector<16x128xf32>
      %37 = arith.mulf %29, %36 : vector<16x128xf32>
      %c0_21 = arith.constant 0 : index
      %c0_22 = arith.constant 0 : index
      %38 = vector.load %arg6[%c0_21, %c0_22] : memref<16x128xf32, #tpu.memory_space<vmem>>, vector<16x128xf32>
      tpu.vector_store %arg6[%c0_21, %c0_22], %37 {strides = array<i32>} : memref<16x128xf32, #tpu.memory_space<vmem>>, vector<16x128xf32>,
    } else {
    }
    return
  }
  func.func @transform_0(%arg0: i32, %arg1: i32) -> (i32, i32) {
    %c0_i32 = arith.constant 0 : i32
    return %arg0, %arg1 : i32, i32
  }
  func.func @transform_1(%arg0: i32, %arg1: i32) -> (i32, i32) {
    %c0_i32 = arith.constant 0 : i32
    %c0_i32_0 = arith.constant 0 : i32
    %c0_i32_1 = arith.constant 0 : i32
    return %c0_i32, %c0_i32_0 : i32, i32
  }
  func.func @transform_2(%arg0: i32, %arg1: i32) -> (i32, i32) {
    %c0_i32 = arith.constant 0 : i32
    %c0_i32_0 = arith.constant 0 : i32
    %c0_i32_1 = arith.constant 0 : i32
    return %c0_i32, %c0_i32_0 : i32, i32
  }
  func.func @transform_3(%arg0: i32, %arg1: i32) -> (i32, i32) {
    %c0_i32 = arith.constant 0 : i32
    %c0_i32_0 = arith.constant 0 : i32
    %c0_i32_1 = arith.constant 0 : i32
    return %c0_i32, %c0_i32_0 : i32, i32
  }
  func.func @transform_4(%arg0: i32, %arg1: i32) -> (i32, i32) {
    %c0_i32 = arith.constant 0 : i32
    %c0_i32_0 = arith.constant 0 : i32
    return %arg0, %c0_i32 : i32, i32
  }
}

</mosaic_0001>

<llo_original>
// kernel: tpu_custom_call.1
$region0: #{tpu_custom_call.1}
  #allocation0 [shape = 'u32[]', space=smem, size = 0x4, offset = 0x4, fixed_abs, tag = 'smem constant byte address 0x4 - core index']
  #allocation1 [shape = 'u32[144,128]{1,0:T(1,128)}', space=vmem, size = 0x12000, scoped, tag = 'internal scratch']
  #allocation2 [shape = 'f32[16,128]{1,0:T(8,128)}', space=vmem, size = 0x2000, scoped, tag = 'scratch operand']
  %s0 = inlined_call_operand.vmem [shape: s32[16,8], index: 0, kind: input, shape index: {}]
  %s1 = inlined_call_operand.hbm [shape: f32[48,128], index: 1, kind: input, shape index: {}]
  %s2 = inlined_call_operand.hbm [shape: bf16[128,128], index: 2, kind: input, shape index: {}]
  %s3 = inlined_call_operand.vmem [shape: f32[1,128], index: 3, kind: input, shape index: {}]
  %s4 = inlined_call_operand.hbm [shape: f32[16,128], index: 4, kind: output, shape index: {}]
  %s5 = sld [smem:[#allocation0]]
  $region42: #{tpu_custom_call.1} parent=0
    _
  %s7 = ssub.s32 1, %s5
  %s8 = scalar_select 0, %s7, %s5
  $region1: #{tpu_custom_call.1} parent=0
    #allocation3 [shape = 'u8[24576]{0}', space=vmem, size = 0x6000, scoped, tag = 'input window, operand 1, single buffered']
    #allocation4 [shape = 's32[1]{0}', space=sflag, size = 0x4, scoped, tag = 'scoped memory for tpu_custom_call.1']
    #allocation5 [shape = 's32[1]{0}', space=sflag, size = 0x4, scoped, tag = 'scoped memory for tpu_custom_call.1']
    #allocation6 [shape = 'u8[32768]{0}', space=vmem, size = 0x8000, scoped, tag = 'input window, operand 2, single buffered']
    #allocation7 [shape = 's32[1]{0}', space=sflag, size = 0x4, scoped, tag = 'scoped memory for tpu_custom_call.1']
    #allocation8 [shape = 'u8[8192]{0}', space=vmem, size = 0x2000, scoped, tag = 'output window, operand 0, single buffered']
    %9 = vsyncpa [#allocation4], 0
    %10 = vsyncpa [#allocation7], 0
    %11 = vsyncpa [#allocation5], 0
    // Predicated region
    $region2: #{tpu_custom_call.1} parent=1 // pred_check
      _
    $region3: #{tpu_custom_call.1} parent=1 // pred_check_branch
      %13 = sbr.rel (0) target = $region5
    $region4: #{tpu_custom_call.1} parent=1 // pred_region
      _
    $region5: #{tpu_custom_call.1} parent=1 // pred_fallthru
      _
    // Predicated region
    $region6: #{tpu_custom_call.1} parent=1 // pred_check
      _
    $region7: #{tpu_custom_call.1} parent=1 // pred_check_branch
      %15 = sbr.rel (0) target = $region9
    $region8: #{tpu_custom_call.1} parent=1 // pred_region
      %s17 = ssub.s32 768, 768
      %18 = vsyncadd [#allocation4], %s17
      %s19 = sshll.u32 [#allocation3], 4
      %s20 = int_to_ptr.vmem [resolvable:$true] %s19
      %25 = dma.hbm_to_vmem [thread:$0]  %s1, 768, %s20, [#allocation4], 128, 128, 8
    $region9: #{tpu_custom_call.1} parent=1 // pred_fallthru
      _
    // Predicated region
    $region10: #{tpu_custom_call.1} parent=1 // pred_check
      _
    $region11: #{tpu_custom_call.1} parent=1 // pred_check_branch
      %27 = sbr.rel (0) target = $region13
    $region12: #{tpu_custom_call.1} parent=1 // pred_region
      %s29 = ssub.s32 1024, 1024
      %30 = vsyncadd [#allocation7], %s29
      %s31 = sshll.u32 [#allocation6], 4
      %s32 = int_to_ptr.vmem [resolvable:$true] %s31
      %37 = dma.hbm_to_vmem [thread:$0]  %s2, 1024, %s32, [#allocation7], 64, 64, 4
    $region13: #{tpu_custom_call.1} parent=1 // pred_fallthru
      _
    // Predicated region
    $region14: #{tpu_custom_call.1} parent=1 // pred_check
      _
    $region15: #{tpu_custom_call.1} parent=1 // pred_check_branch
      %39 = sbr.rel (0) target = $region17
    $region16: #{tpu_custom_call.1} parent=1 // pred_region
      _
    $region17: #{tpu_custom_call.1} parent=1 // pred_fallthru
      _
    // Predicated region
    $region18: #{tpu_custom_call.1} parent=1 // pred_check
      _
    $region19: #{tpu_custom_call.1} parent=1 // pred_check_branch
      %41 = sbr.rel (0) target = $region21
    $region20: #{tpu_custom_call.1} parent=1 // pred_region
      %42 = dma.done [#allocation4], 768
    $region21: #{tpu_custom_call.1} parent=1 // pred_fallthru
      _
    // Predicated region
    $region22: #{tpu_custom_call.1} parent=1 // pred_check
      _
    $region23: #{tpu_custom_call.1} parent=1 // pred_check_branch
      %44 = sbr.rel (0) target = $region25
    $region24: #{tpu_custom_call.1} parent=1 // pred_region
      %45 = dma.done [#allocation7], 1024
    $region25: #{tpu_custom_call.1} parent=1 // pred_fallthru
      _
    %p47 = scmp.eq.s32.totalorder 0, 0
    // Predicated region
    $region26: #{tpu_custom_call.1} parent=1 // pred_check
      %p48 = pneg %p47
    $region27: #{tpu_custom_call.1} parent=1 // pred_check_branch
      %50 = sbr.rel (%p48) target = $region29
    $region28: #{tpu_custom_call.1} parent=1 // pred_region
      %51 = vst [vmem:[#allocation2] sm:$0xff] 0.0
      %52 = vst [vmem:[#allocation2 + $0x8] sm:$0xff] 0.0
    $region29: #{tpu_custom_call.1} parent=1 // pred_fallthru
      _
    %v53 = vld [vmem:[%s0] sm:$0xff]
    %v54 = vld [vmem:[%s0 + $0x8] sm:$0xff]
    %v55 = vlaneseq
    %v56 = vand.u32 %v55, 127
    %v57 = vlaneseq
    %v58 = vshrl.u32 %v57, 7
    %v59 = vsub.s32 0, %v58
    %v60 = vrot.slane %v53, %v59
    %62 = vbcast.lane.b32.xlu0 %v60, 256
    %v63 = vpop.permute.xlu0 %62
    %v64 = vlaneseq
    %v65 = vshrl.u32 %v64, 7
    %v66 = vsub.s32 1, %v65
    %v67 = vrot.slane %v53, %v66
    %69 = vbcast.lane.b32.xlu0 %v67, 256
    %v70 = vpop.permute.xlu0 %69
    %v71 = vlaneseq
    %v72 = vshrl.u32 %v71, 7
    %v73 = vsub.s32 2, %v72
    %v74 = vrot.slane %v53, %v73
    %76 = vbcast.lane.b32.xlu0 %v74, 256
    %v77 = vpop.permute.xlu0 %76
    %v78 = vlaneseq
    %v79 = vshrl.u32 %v78, 7
    %v80 = vsub.s32 3, %v79
    %v81 = vrot.slane %v53, %v80
    %83 = vbcast.lane.b32.xlu0 %v81, 256
    %v84 = vpop.permute.xlu0 %83
    %v85 = vlaneseq
    %v86 = vshrl.u32 %v85, 7
    %v87 = vsub.s32 4, %v86
    %v88 = vrot.slane %v53, %v87
    %90 = vbcast.lane.b32.xlu0 %v88, 256
    %v91 = vpop.permute.xlu0 %90
    %v92 = vlaneseq
    %v93 = vshrl.u32 %v92, 7
    %v94 = vsub.s32 5, %v93
    %v95 = vrot.slane %v53, %v94
    %97 = vbcast.lane.b32.xlu0 %v95, 256
    %v98 = vpop.permute.xlu0 %97
    %v99 = vlaneseq
    %v100 = vshrl.u32 %v99, 7
    %v101 = vsub.s32 6, %v100
    %v102 = vrot.slane %v53, %v101
    %104 = vbcast.lane.b32.xlu0 %v102, 256
    %v105 = vpop.permute.xlu0 %104
    %v106 = vlaneseq
    %v107 = vshrl.u32 %v106, 7
    %v108 = vsub.s32 7, %v107
    %v109 = vrot.slane %v53, %v108
    %111 = vbcast.lane.b32.xlu0 %v109, 256
    %v112 = vpop.permute.xlu0 %111
    %v113 = vlaneseq
    %v114 = vshrl.u32 %v113, 7
    %v115 = vsub.s32 0, %v114
    %v116 = vrot.slane %v54, %v115
    %118 = vbcast.lane.b32.xlu0 %v116, 256
    %v119 = vpop.permute.xlu0 %118
    %v120 = vlaneseq
    %v121 = vshrl.u32 %v120, 7
    %v122 = vsub.s32 1, %v121
    %v123 = vrot.slane %v54, %v122
    %125 = vbcast.lane.b32.xlu0 %v123, 256
    %v126 = vpop.permute.xlu0 %125
    %v127 = vlaneseq
    %v128 = vshrl.u32 %v127, 7
    %v129 = vsub.s32 2, %v128
    %v130 = vrot.slane %v54, %v129
    %132 = vbcast.lane.b32.xlu0 %v130, 256
    %v133 = vpop.permute.xlu0 %132
    %v134 = vlaneseq
    %v135 = vshrl.u32 %v134, 7
    %v136 = vsub.s32 3, %v135
    %v137 = vrot.slane %v54, %v136
    %139 = vbcast.lane.b32.xlu0 %v137, 256
    %v140 = vpop.permute.xlu0 %139
    %v141 = vlaneseq
    %v142 = vshrl.u32 %v141, 7
    %v143 = vsub.s32 4, %v142
    %v144 = vrot.slane %v54, %v143
    %146 = vbcast.lane.b32.xlu0 %v144, 256
    %v147 = vpop.permute.xlu0 %146
    %v148 = vlaneseq
    %v149 = vshrl.u32 %v148, 7
    %v150 = vsub.s32 5, %v149
    %v151 = vrot.slane %v54, %v150
    %153 = vbcast.lane.b32.xlu0 %v151, 256
    %v154 = vpop.permute.xlu0 %153
    %v155 = vlaneseq
    %v156 = vshrl.u32 %v155, 7
    %v157 = vsub.s32 6, %v156
    %v158 = vrot.slane %v54, %v157
    %160 = vbcast.lane.b32.xlu0 %v158, 256
    %v161 = vpop.permute.xlu0 %160
    %v162 = vlaneseq
    %v163 = vshrl.u32 %v162, 7
    %v164 = vsub.s32 7, %v163
    %v165 = vrot.slane %v54, %v164
    %167 = vbcast.lane.b32.xlu0 %v165, 256
    %v168 = vpop.permute.xlu0 %167
    %vm169 = vcmp.eq.s32.totalorder %v63, %v56
    %vm170 = vcmp.eq.s32.totalorder %v70, %v56
    %vm171 = vcmp.eq.s32.totalorder %v77, %v56
    %vm172 = vcmp.eq.s32.totalorder %v84, %v56
    %vm173 = vcmp.eq.s32.totalorder %v91, %v56
    %vm174 = vcmp.eq.s32.totalorder %v98, %v56
    %vm175 = vcmp.eq.s32.totalorder %v105, %v56
    %vm176 = vcmp.eq.s32.totalorder %v112, %v56
    %vm177 = vcmp.eq.s32.totalorder %v119, %v56
    %vm178 = vcmp.eq.s32.totalorder %v126, %v56
    %vm179 = vcmp.eq.s32.totalorder %v133, %v56
    %vm180 = vcmp.eq.s32.totalorder %v140, %v56
    %vm181 = vcmp.eq.s32.totalorder %v147, %v56
    %vm182 = vcmp.eq.s32.totalorder %v154, %v56
    %vm183 = vcmp.eq.s32.totalorder %v161, %v56
    %vm184 = vcmp.eq.s32.totalorder %v168, %v56
    %v185 = vsel %vm169, 1, 0
    %v186 = vsel %vm170, 1, 0
    %v187 = vsel %vm171, 1, 0
    %v188 = vsel %vm172, 1, 0
    %v189 = vsel %vm173, 1, 0
    %v190 = vsel %vm174, 1, 0
    %v191 = vsel %vm175, 1, 0
    %v192 = vsel %vm176, 1, 0
    %v193 = vsel %vm177, 1, 0
    %v194 = vsel %vm178, 1, 0
    %v195 = vsel %vm179, 1, 0
    %v196 = vsel %vm180, 1, 0
    %v197 = vsel %vm181, 1, 0
    %v198 = vsel %vm182, 1, 0
    %v199 = vsel %vm183, 1, 0
    %v200 = vsel %vm184, 1, 0
    %v201 = vcvt.s32.f32 %v185
    %v202 = vcvt.s32.f32 %v186
    %v203 = vcvt.s32.f32 %v187
    %v204 = vcvt.s32.f32 %v188
    %v205 = vcvt.s32.f32 %v189
    %v206 = vcvt.s32.f32 %v190
    %v207 = vcvt.s32.f32 %v191
    %v208 = vcvt.s32.f32 %v192
    %v209 = vcvt.s32.f32 %v193
    %v210 = vcvt.s32.f32 %v194
    %v211 = vcvt.s32.f32 %v195
    %v212 = vcvt.s32.f32 %v196
    %v213 = vcvt.s32.f32 %v197
    %v214 = vcvt.s32.f32 %v198
    %v215 = vcvt.s32.f32 %v199
    %v216 = vcvt.s32.f32 %v200
    %vm217 = vcmask 392192
    %v218 = vsel %vm217, %v201, 0.0
    %v219 = vrot.slane %v218, 4
    %v220 = vadd.f32 %v218, %v219
    %v221 = vrot.slane %v220, 2
    %v222 = vadd.f32 %v220, %v221
    %v223 = vrot.slane %v222, 1
    %v224 = vadd.f32 %v222, %v223
    %v225 = vsel %vm217, %v202, 0.0
    %v226 = vrot.slane %v225, 4
    %v227 = vadd.f32 %v225, %v226
    %v228 = vrot.slane %v227, 2
    %v229 = vadd.f32 %v227, %v228
    %v230 = vrot.slane %v229, 1
    %v231 = vadd.f32 %v229, %v230
    %v232 = vsel %vm217, %v203, 0.0
    %v233 = vrot.slane %v232, 4
    %v234 = vadd.f32 %v232, %v233
    %v235 = vrot.slane %v234, 2
    %v236 = vadd.f32 %v234, %v235
    %v237 = vrot.slane %v236, 1
    %v238 = vadd.f32 %v236, %v237
    %v239 = vsel %vm217, %v204, 0.0
    %v240 = vrot.slane %v239, 4
    %v241 = vadd.f32 %v239, %v240
    %v242 = vrot.slane %v241, 2
    %v243 = vadd.f32 %v241, %v242
    %v244 = vrot.slane %v243, 1
    %v245 = vadd.f32 %v243, %v244
    %v246 = vsel %vm217, %v205, 0.0
    %v247 = vrot.slane %v246, 4
    %v248 = vadd.f32 %v246, %v247
    %v249 = vrot.slane %v248, 2
    %v250 = vadd.f32 %v248, %v249
    %v251 = vrot.slane %v250, 1
    %v252 = vadd.f32 %v250, %v251
    %v253 = vsel %vm217, %v206, 0.0
    %v254 = vrot.slane %v253, 4
    %v255 = vadd.f32 %v253, %v254
    %v256 = vrot.slane %v255, 2
    %v257 = vadd.f32 %v255, %v256
    %v258 = vrot.slane %v257, 1
    %v259 = vadd.f32 %v257, %v258
    %v260 = vsel %vm217, %v207, 0.0
    %v261 = vrot.slane %v260, 4
    %v262 = vadd.f32 %v260, %v261
    %v263 = vrot.slane %v262, 2
    %v264 = vadd.f32 %v262, %v263
    %v265 = vrot.slane %v264, 1
    %v266 = vadd.f32 %v264, %v265
    %v267 = vsel %vm217, %v208, 0.0
    %v268 = vrot.slane %v267, 4
    %v269 = vadd.f32 %v267, %v268
    %v270 = vrot.slane %v269, 2
    %v271 = vadd.f32 %v269, %v270
    %v272 = vrot.slane %v271, 1
    %v273 = vadd.f32 %v271, %v272
    %v274 = vsel %vm217, %v209, 0.0
    %v275 = vrot.slane %v274, 4
    %v276 = vadd.f32 %v274, %v275
    %v277 = vrot.slane %v276, 2
    %v278 = vadd.f32 %v276, %v277
    %v279 = vrot.slane %v278, 1
    %v280 = vadd.f32 %v278, %v279
    %v281 = vsel %vm217, %v210, 0.0
    %v282 = vrot.slane %v281, 4
    %v283 = vadd.f32 %v281, %v282
    %v284 = vrot.slane %v283, 2
    %v285 = vadd.f32 %v283, %v284
    %v286 = vrot.slane %v285, 1
    %v287 = vadd.f32 %v285, %v286
    %v288 = vsel %vm217, %v211, 0.0
    %v289 = vrot.slane %v288, 4
    %v290 = vadd.f32 %v288, %v289
    %v291 = vrot.slane %v290, 2
    %v292 = vadd.f32 %v290, %v291
    %v293 = vrot.slane %v292, 1
    %v294 = vadd.f32 %v292, %v293
    %v295 = vsel %vm217, %v212, 0.0
    %v296 = vrot.slane %v295, 4
    %v297 = vadd.f32 %v295, %v296
    %v298 = vrot.slane %v297, 2
    %v299 = vadd.f32 %v297, %v298
    %v300 = vrot.slane %v299, 1
    %v301 = vadd.f32 %v299, %v300
    %v302 = vsel %vm217, %v213, 0.0
    %v303 = vrot.slane %v302, 4
    %v304 = vadd.f32 %v302, %v303
    %v305 = vrot.slane %v304, 2
    %v306 = vadd.f32 %v304, %v305
    %v307 = vrot.slane %v306, 1
    %v308 = vadd.f32 %v306, %v307
    %v309 = vsel %vm217, %v214, 0.0
    %v310 = vrot.slane %v309, 4
    %v311 = vadd.f32 %v309, %v310
    %v312 = vrot.slane %v311, 2
    %v313 = vadd.f32 %v311, %v312
    %v314 = vrot.slane %v313, 1
    %v315 = vadd.f32 %v313, %v314
    %v316 = vsel %vm217, %v215, 0.0
    %v317 = vrot.slane %v316, 4
    %v318 = vadd.f32 %v316, %v317
    %v319 = vrot.slane %v318, 2
    %v320 = vadd.f32 %v318, %v319
    %v321 = vrot.slane %v320, 1
    %v322 = vadd.f32 %v320, %v321
    %v323 = vsel %vm217, %v216, 0.0
    %v324 = vrot.slane %v323, 4
    %v325 = vadd.f32 %v323, %v324
    %v326 = vrot.slane %v325, 2
    %v327 = vadd.f32 %v325, %v326
    %v328 = vrot.slane %v327, 1
    %v329 = vadd.f32 %v327, %v328
    %v330 = vld [vmem:[#allocation2] sm:$0xff]
    %v331 = vld [vmem:[#allocation2 + $0x8] sm:$0xff]
    %v332 = vld [vmem:[#allocation3] sm:$0xff]
    %v333 = vld [vmem:[#allocation3 + $0x8] sm:$0xff]
    %v334 = vld [vmem:[#allocation3 + $0x10] sm:$0xff]
    %v335 = vld [vmem:[#allocation3 + $0x18] sm:$0xff]
    %v336 = vld [vmem:[#allocation3 + $0x20] sm:$0xff]
    %v337 = vld [vmem:[#allocation3 + $0x28] sm:$0xff]
    %vm354 = vcmask 1041409
    %v355 = vsel %vm354, %v231, %v224
    %vm356 = vcmask 1042434
    %v357 = vsel %vm356, %v238, %v355
    %vm358 = vcmask 1043459
    %v359 = vsel %vm358, %v245, %v357
    %vm360 = vcmask 1044484
    %v361 = vsel %vm360, %v252, %v359
    %vm362 = vcmask 1045509
    %v363 = vsel %vm362, %v259, %v361
    %vm364 = vcmask 1046534
    %v365 = vsel %vm364, %v266, %v363
    %vm366 = vcmask 1047559
    %v367 = vsel %vm366, %v273, %v365
    %v368 = vsel %vm354, %v287, %v280
    %v369 = vsel %vm356, %v294, %v368
    %v370 = vsel %vm358, %v301, %v369
    %v371 = vsel %vm360, %v308, %v370
    %v372 = vsel %vm362, %v315, %v371
    %v373 = vsel %vm364, %v322, %v372
    %v374 = vsel %vm366, %v329, %v373
    %v375 = vsel %vm217, %v367, 0
    %v377 = vsel %vm217, %v374, 0
    %379 = vmatprep.subr.mxu0 0.0
    %380 = vmatpush1.msra.mxu0 0.0
    %381 = vmatprep.subr.mxu0 0.0
    %382 = vmatpush1.msra.mxu0 0.0
    %383 = vmatprep.subr.mxu0 0.0
    %384 = vmatpush1.msra.mxu0 0.0
    %385 = vmatprep.subr.mxu0 0.0
    %386 = vmatpush1.msra.mxu0 0.0
    %387 = vmatprep.subr.mxu0 0.0
    %388 = vmatpush1.msra.mxu0 0.0
    %389 = vmatprep.subr.mxu0 0.0
    %390 = vmatpush1.msra.mxu0 0.0
    %391 = vmatprep.subr.mxu0 0.0
    %392 = vmatpush1.msra.mxu0 0.0
    %393 = vmatprep.subr.mxu0 0.0
    %394 = vmatpush1.msra.mxu0 0.0
    %395 = vmatprep.subr.mxu0 0.0
    %396 = vmatpush1.msra.mxu0 0.0
    %397 = vmatprep.subr.mxu0 0.0
    %398 = vmatpush1.msra.mxu0 0.0
    %399 = vmatprep.subr.mxu0 0.0
    %400 = vmatpush1.msra.mxu0 %v337
    %401 = vmatprep.subr.mxu0 0.0
    %402 = vmatpush1.msra.mxu0 %v336
    %403 = vmatprep.subr.mxu0 0.0
    %404 = vmatpush1.msra.mxu0 %v335
    %405 = vmatprep.subr.mxu0 0.0
    %406 = vmatpush1.msra.mxu0 %v334
    %407 = vmatprep.subr.mxu0 0.0
    %408 = vmatpush1.msra.mxu0 %v333
    %409 = vmatprep.subr.mxu0 0.0
    %410 = vmatpush1.msra.mxu0 %v332
    %411 = vmatprep.subr.mxu0 0.0
    %412 = vmatpush2.msra.mxu0 0.0
    %413 = vmatprep.subr.mxu0 0.0
    %414 = vmatpush2.msra.mxu0 0.0
    %415 = vmatprep.subr.mxu0 0.0
    %416 = vmatpush2.msra.mxu0 0.0
    %417 = vmatprep.subr.mxu0 0.0
    %418 = vmatpush2.msra.mxu0 0.0
    %419 = vmatprep.subr.mxu0 0.0
    %420 = vmatpush2.msra.mxu0 0.0
    %421 = vmatprep.subr.mxu0 0.0
    %422 = vmatpush2.msra.mxu0 0.0
    %423 = vmatprep.subr.mxu0 0.0
    %424 = vmatpush2.msra.mxu0 0.0
    %425 = vmatprep.subr.mxu0 0.0
    %426 = vmatpush2.msra.mxu0 0.0
    %427 = vmatprep.subr.mxu0 0.0
    %428 = vmatpush2.msra.mxu0 0.0
    %429 = vmatprep.subr.mxu0 0.0
    %430 = vmatpush2.msra.mxu0 0.0
    %431 = vmatprep.subr.mxu0 0.0
    %432 = vmatpush2.msra.mxu0 0.0
    %433 = vmatprep.subr.mxu0 0.0
    %434 = vmatpush2.msra.mxu0 0.0
    %435 = vmatprep.subr.mxu0 0.0
    %436 = vmatpush2.msra.mxu0 0.0
    %437 = vmatprep.subr.mxu0 0.0
    %438 = vmatpush2.msra.mxu0 0.0
    %439 = vmatprep.subr.mxu0 0.0
    %440 = vmatpush2.msra.mxu0 0.0
    %441 = vmatprep.subr.mxu0 0.0
    %442 = vmatpush2.msra.mxu0 0.0
    %443 = vmatprep.mubr.f32.mxu0 0.0
    %444 = vmatmul.mubr.f32.gmra.mxu0 %v375
    %v445 = vpop.f32.mrf.mxu0
    %v446 = vadd.f32 0.0, %v445
    %v447 = vpop.f32.mrf.mxu0
    %448 = vmatprep.mubr.f32.mxu0 0.0
    %449 = vmatmul.mubr.f32.gmra.mxu0 %v377
    %v450 = vpop.f32.mrf.mxu0
    %v451 = vadd.f32 0.0, %v450
    %v452 = vpop.f32.mrf.mxu0
    %453 = vdwg.mxu0
    %v454 = vadd.f32 %v330, %v446
    %v455 = vadd.f32 %v331, %v451
    %456 = vst [vmem:[#allocation2] sm:$0xff] %v454
    %457 = vst [vmem:[#allocation2 + $0x8] sm:$0xff] %v455
    // Predicated region
    $region30: #{tpu_custom_call.1} parent=1 // pred_check
      %p458 = pneg %p47
    $region31: #{tpu_custom_call.1} parent=1 // pred_check_branch
      %460 = sbr.rel (%p458) target = $region33
    $region32: #{tpu_custom_call.1} parent=1 // pred_region
      %v461 = vld [vmem:[#allocation2] sm:$0xff]
      %v462 = vld [vmem:[#allocation2 + $0x8] sm:$0xff]
      %v463 = vld [vmem:[#allocation6] sm:$0xf]
      %v464 = vld [vmem:[#allocation6 + $0x4] sm:$0xf]
      %v465 = vld [vmem:[#allocation6 + $0x8] sm:$0xf]
      %v466 = vld [vmem:[#allocation6 + $0xc] sm:$0xf]
      %v467 = vld [vmem:[#allocation6 + $0x10] sm:$0xf]
      %v468 = vld [vmem:[#allocation6 + $0x14] sm:$0xf]
      %v469 = vld [vmem:[#allocation6 + $0x18] sm:$0xf]
      %v470 = vld [vmem:[#allocation6 + $0x1c] sm:$0xf]
      %v471 = vld [vmem:[#allocation6 + $0x20] sm:$0xf]
      %v472 = vld [vmem:[#allocation6 + $0x24] sm:$0xf]
      %v473 = vld [vmem:[#allocation6 + $0x28] sm:$0xf]
      %v474 = vld [vmem:[#allocation6 + $0x2c] sm:$0xf]
      %v475 = vld [vmem:[#allocation6 + $0x30] sm:$0xf]
      %v476 = vld [vmem:[#allocation6 + $0x34] sm:$0xf]
      %v477 = vld [vmem:[#allocation6 + $0x38] sm:$0xf]
      %v478 = vld [vmem:[#allocation6 + $0x3c] sm:$0xf]
      %v479 = vld [vmem:[%s3] sm:$0x1]
      %v480 = vmul.f32 %v461, 0.125
      %v481 = vmul.f32 %v462, 0.125
      %v482 = vpack.c.bf16 %v481, %v480
      %v484 = vlaneseq
      %v485 = vshrl.u32 %v484, 7
      %v486 = vsub.s32 0, %v485
      %v487 = vrot.slane %v479, %v486
      %v505 = vunpack.c.l.b16 %v463
      %v506 = vunpack.c.l.b16 %v464
      %v507 = vunpack.c.l.b16 %v465
      %v508 = vunpack.c.l.b16 %v466
      %v509 = vunpack.c.l.b16 %v467
      %v510 = vunpack.c.l.b16 %v468
      %v511 = vunpack.c.l.b16 %v469
      %v512 = vunpack.c.l.b16 %v470
      %v513 = vunpack.c.l.b16 %v471
      %v514 = vunpack.c.l.b16 %v472
      %v515 = vunpack.c.l.b16 %v473
      %v516 = vunpack.c.l.b16 %v474
      %v517 = vunpack.c.l.b16 %v475
      %v518 = vunpack.c.l.b16 %v476
      %v519 = vunpack.c.l.b16 %v477
      %v520 = vunpack.c.l.b16 %v478
      %v521 = vpack.c.b16 %v506, %v505
      %v522 = vpack.c.b16 %v508, %v507
      %v523 = vpack.c.b16 %v510, %v509
      %v524 = vpack.c.b16 %v512, %v511
      %v525 = vpack.c.b16 %v514, %v513
      %v526 = vpack.c.b16 %v516, %v515
      %v527 = vpack.c.b16 %v518, %v517
      %v528 = vpack.c.b16 %v520, %v519
      %537 = vmatprep.subr.bf16.mxu0 0
      %538 = vmatpush1.bf16.msra.mxu0 %v528
      %539 = vmatprep.subr.bf16.mxu0 0
      %540 = vmatpush1.bf16.msra.mxu0 %v527
      %541 = vmatprep.subr.bf16.mxu0 0
      %542 = vmatpush1.bf16.msra.mxu0 %v526
      %543 = vmatprep.subr.bf16.mxu0 0
      %544 = vmatpush1.bf16.msra.mxu0 %v525
      %545 = vmatprep.subr.bf16.mxu0 0
      %546 = vmatpush1.bf16.msra.mxu0 %v524
      %547 = vmatprep.subr.bf16.mxu0 0
      %548 = vmatpush1.bf16.msra.mxu0 %v523
      %549 = vmatprep.subr.bf16.mxu0 0
      %550 = vmatpush1.bf16.msra.mxu0 %v522
      %551 = vmatprep.subr.bf16.mxu0 0
      %552 = vmatpush1.bf16.msra.mxu0 %v521
      %553 = vmatprep.subr.bf16.mxu0 0
      %554 = vmatpush2.bf16.msra.mxu0 0
      %555 = vmatprep.subr.bf16.mxu0 0
      %556 = vmatpush2.bf16.msra.mxu0 0
      %557 = vmatprep.subr.bf16.mxu0 0
      %558 = vmatpush2.bf16.msra.mxu0 0
      %559 = vmatprep.subr.bf16.mxu0 0
      %560 = vmatpush2.bf16.msra.mxu0 0
      %561 = vmatprep.subr.bf16.mxu0 0
      %562 = vmatpush2.bf16.msra.mxu0 0
      %563 = vmatprep.subr.bf16.mxu0 0
      %564 = vmatpush2.bf16.msra.mxu0 0
      %565 = vmatprep.subr.bf16.mxu0 0
      %566 = vmatpush2.bf16.msra.mxu0 0
      %567 = vmatprep.subr.bf16.mxu0 0
      %568 = vmatpush2.bf16.msra.mxu0 0
      %569 = vmatprep.mubr.bf16.mxu0 0
      %570 = vmatmul.mubr.bf16.gmra.mxu0 %v482
      %v571 = vpop.f32.mrf.mxu0
      %v572 = vadd.f32 %v487, %v571
      %v573 = vpop.f32.mrf.mxu0
      %v574 = vpop.f32.mrf.mxu0
      %v575 = vadd.f32 %v487, %v574
      %v576 = vpop.f32.mrf.mxu0
      %577 = vdwg.mxu0
      %v578 = vtanh.pop %v572
      %v579 = vtanh.pop %v575
      %v580 = vmul.f32 %v578, %v578
      %v581 = vmul.f32 %v579, %v579
      %582 = vadd.xlane.f32.xlu0 %v580
      %v583 = vpop.xlane.xlu0 %582
      %584 = vadd.xlane.f32.xlu0 %v581
      %v585 = vpop.xlane.xlu0 %584
      %v586 = vmax.f32 %v583, 1e-24
      %v587 = vmax.f32 %v585, 1e-24
      %v588 = vrsqrt.pop %v586
      %v589 = vrsqrt.pop %v587
      %v590 = vmul.f32 %v578, %v588
      %v591 = vmul.f32 %v579, %v589
      %592 = vst [vmem:[#allocation8] sm:$0xff] %v590
      %593 = vst [vmem:[#allocation8 + $0x8] sm:$0xff] %v591
    $region33: #{tpu_custom_call.1} parent=1 // pred_fallthru
      _
    // Predicated region
    $region34: #{tpu_custom_call.1} parent=1 // pred_check
      _
    $region35: #{tpu_custom_call.1} parent=1 // pred_check_branch
      %595 = sbr.rel (0) target = $region37
    $region36: #{tpu_custom_call.1} parent=1 // pred_region
      %s597 = ssub.s32 256, 256
      %598 = vsyncadd [#allocation5], %s597
      %s599 = sshll.u32 [#allocation8], 4
      %s600 = int_to_ptr.vmem [resolvable:$true] %s599
      %605 = dma.vmem_to_hbm [thread:$0]  %s600, 256, %s4, [#allocation5], 128, 128, 8
    $region37: #{tpu_custom_call.1} parent=1 // pred_fallthru
      _
    // Predicated region
    $region38: #{tpu_custom_call.1} parent=1 // pred_check
      _
    $region39: #{tpu_custom_call.1} parent=1 // pred_check_branch
      %607 = sbr.rel (0) target = $region41
    $region40: #{tpu_custom_call.1} parent=1 // pred_region
      %608 = dma.done [#allocation5], 256
    $region41: #{tpu_custom_call.1} parent=1 // pred_fallthru
      _
    %609 = vsyncpa [#allocation4], 1
    %610 = vsyncpa [#allocation7], 1
    %611 = vsyncpa [#allocation5], 1

// kernel: tpu_custom_call.1
$region0: #{tpu_custom_call.1}
  #allocation0 [shape = 'u32[]', space=smem, size = 0x4, offset = 0x4, fixed_abs, tag = 'smem constant byte address 0x4 - core index']
  #allocation1 [shape = 'u32[144,128]{1,0:T(1,128)}', space=vmem, size = 0x12000, scoped, tag = 'internal scratch']
  #allocation2 [shape = 'f32[16,128]{1,0:T(8,128)}', space=vmem, size = 0x2000, scoped, tag = 'scratch operand']
  %s0 = inlined_call_operand.vmem [shape: s32[16,8], index: 0, kind: input, shape index: {}]
  %s1 = inlined_call_operand.hbm [shape: f32[48,128], index: 1, kind: input, shape index: {}]
  %s2 = inlined_call_operand.hbm [shape: bf16[128,128], index: 2, kind: input, shape index: {}]
  %s3 = inlined_call_operand.vmem [shape: f32[1,128], index: 3, kind: input, shape index: {}]
  %s4 = inlined_call_operand.hbm [shape: f32[16,128], index: 4, kind: output, shape index: {}]
  %s5 = sld [smem:[#allocation0]]
  $region42: #{tpu_custom_call.1} parent=0
    _
  %s7 = ssub.s32 1, %s5
  %s8 = scalar_select 0, %s7, %s5
  $region1: #{tpu_custom_call.1} parent=0
    #allocation3 [shape = 'u8[24576]{0}', space=vmem, size = 0x6000, scoped, tag = 'input window, operand 1, single buffered']
    #allocation4 [shape = 's32[1]{0}', space=sflag, size = 0x4, scoped, tag = 'scoped memory for tpu_custom_call.1']
    #allocation5 [shape = 's32[1]{0}', space=sflag, size = 0x4, scoped, tag = 'scoped memory for tpu_custom_call.1']
    #allocation6 [shape = 'u8[32768]{0}', space=vmem, size = 0x8000, scoped, tag = 'input window, operand 2, single buffered']
    #allocation7 [shape = 's32[1]{0}', space=sflag, size = 0x4, scoped, tag = 'scoped memory for tpu_custom_call.1']
    #allocation8 [shape = 'u8[8192]{0}', space=vmem, size = 0x2000, scoped, tag = 'output window, operand 0, single buffered']
    %9 = vsyncpa [#allocation4], 0
    %10 = vsyncpa [#allocation7], 0
    %11 = vsyncpa [#allocation5], 0
    // Predicated region
    $region2: #{tpu_custom_call.1} parent=1 // pred_check
      _
    $region3: #{tpu_custom_call.1} parent=1 // pred_check_branch
      %13 = sbr.rel (0) target = $region5
    $region4: #{tpu_custom_call.1} parent=1 // pred_region
      _
    $region5: #{tpu_custom_call.1} parent=1 // pred_fallthru
      _
    // Predicated region
    $region6: #{tpu_custom_call.1} parent=1 // pred_check
      _
    $region7: #{tpu_custom_call.1} parent=1 // pred_check_branch
      %15 = sbr.rel (0) target = $region9
    $region8: #{tpu_custom_call.1} parent=1 // pred_region
      %s17 = ssub.s32 768, 768
      %18 = vsyncadd [#allocation4], %s17
      %s19 = sshll.u32 [#allocation3], 4
      %s20 = int_to_ptr.vmem [resolvable:$true] %s19
      %25 = dma.hbm_to_vmem [thread:$0]  %s1, 768, %s20, [#allocation4], 128, 128, 8
    $region9: #{tpu_custom_call.1} parent=1 // pred_fallthru
      _
    // Predicated region
    $region10: #{tpu_custom_call.1} parent=1 // pred_check
      _
    $region11: #{tpu_custom_call.1} parent=1 // pred_check_branch
      %27 = sbr.rel (0) target = $region13
    $region12: #{tpu_custom_call.1} parent=1 // pred_region
      %s29 = ssub.s32 1024, 1024
      %30 = vsyncadd [#allocation7], %s29
      %s31 = sshll.u32 [#allocation6], 4
      %s32 = int_to_ptr.vmem [resolvable:$true] %s31
      %37 = dma.hbm_to_vmem [thread:$0]  %s2, 1024, %s32, [#allocation7], 64, 64, 4
    $region13: #{tpu_custom_call.1} parent=1 // pred_fallthru
      _
    // Predicated region
    $region14: #{tpu_custom_call.1} parent=1 // pred_check
      _
    $region15: #{tpu_custom_call.1} parent=1 // pred_check_branch
      %39 = sbr.rel (0) target = $region17
    $region16: #{tpu_custom_call.1} parent=1 // pred_region
      _
    $region17: #{tpu_custom_call.1} parent=1 // pred_fallthru
      _
    // Predicated region
    $region18: #{tpu_custom_call.1} parent=1 // pred_check
      _
    $region19: #{tpu_custom_call.1} parent=1 // pred_check_branch
      %41 = sbr.rel (0) target = $region21
    $region20: #{tpu_custom_call.1} parent=1 // pred_region
      %42 = dma.done [#allocation4], 768
    $region21: #{tpu_custom_call.1} parent=1 // pred_fallthru
      _
    // Predicated region
    $region22: #{tpu_custom_call.1} parent=1 // pred_check
      _
    $region23: #{tpu_custom_call.1} parent=1 // pred_check_branch
      %44 = sbr.rel (0) target = $region25
    $region24: #{tpu_custom_call.1} parent=1 // pred_region
      %45 = dma.done [#allocation7], 1024
    $region25: #{tpu_custom_call.1} parent=1 // pred_fallthru
      _
    %p47 = scmp.eq.s32.totalorder 0, 0
    // Predicated region
    $region26: #{tpu_custom_call.1} parent=1 // pred_check
      %p48 = pneg %p47
    $region27: #{tpu_custom_call.1} parent=1 // pred_check_branch
      %50 = sbr.rel (%p48) target = $region29
    $region28: #{tpu_custom_call.1} parent=1 // pred_region
      %51 = vst [vmem:[#allocation2] sm:$0xff] 0.0
      %52 = vst [vmem:[#allocation2 + $0x8] sm:$0xff] 0.0
    $region29: #{tpu_custom_call.1} parent=1 // pred_fallthru
      _
    %v53 = vld [vmem:[%s0] sm:$0xff]
    %v54 = vld [vmem:[%s0 + $0x8] sm:$0xff]
    %v55 = vlaneseq
    %v56 = vand.u32 %v55, 127
    %v57 = vlaneseq
    %v58 = vshrl.u32 %v57, 7
    %v59 = vsub.s32 0, %v58
    %v60 = vrot.slane %v53, %v59
    %62 = vbcast.lane.b32.xlu0 %v60, 256
    %v63 = vpop.permute.xlu0 %62
    %v64 = vlaneseq
    %v65 = vshrl.u32 %v64, 7
    %v66 = vsub.s32 1, %v65
    %v67 = vrot.slane %v53, %v66
    %69 = vbcast.lane.b32.xlu0 %v67, 256
    %v70 = vpop.permute.xlu0 %69
    %v71 = vlaneseq
    %v72 = vshrl.u32 %v71, 7
    %v73 = vsub.s32 2, %v72
    %v74 = vrot.slane %v53, %v73
    %76 = vbcast.lane.b32.xlu0 %v74, 256
    %v77 = vpop.permute.xlu0 %76
    %v78 = vlaneseq
    %v79 = vshrl.u32 %v78, 7
    %v80 = vsub.s32 3, %v79
    %v81 = vrot.slane %v53, %v80
    %83 = vbcast.lane.b32.xlu0 %v81, 256
    %v84 = vpop.permute.xlu0 %83
    %v85 = vlaneseq
    %v86 = vshrl.u32 %v85, 7
    %v87 = vsub.s32 4, %v86
    %v88 = vrot.slane %v53, %v87
    %90 = vbcast.lane.b32.xlu0 %v88, 256
    %v91 = vpop.permute.xlu0 %90
    %v92 = vlaneseq
    %v93 = vshrl.u32 %v92, 7
    %v94 = vsub.s32 5, %v93
    %v95 = vrot.slane %v53, %v94
    %97 = vbcast.lane.b32.xlu0 %v95, 256
    %v98 = vpop.permute.xlu0 %97
    %v99 = vlaneseq
    %v100 = vshrl.u32 %v99, 7
    %v101 = vsub.s32 6, %v100
    %v102 = vrot.slane %v53, %v101
    %104 = vbcast.lane.b32.xlu0 %v102, 256
    %v105 = vpop.permute.xlu0 %104
    %v106 = vlaneseq
    %v107 = vshrl.u32 %v106, 7
    %v108 = vsub.s32 7, %v107
    %v109 = vrot.slane %v53, %v108
    %111 = vbcast.lane.b32.xlu0 %v109, 256
    %v112 = vpop.permute.xlu0 %111
    %v113 = vlaneseq
    %v114 = vshrl.u32 %v113, 7
    %v115 = vsub.s32 0, %v114
    %v116 = vrot.slane %v54, %v115
    %118 = vbcast.lane.b32.xlu0 %v116, 256
    %v119 = vpop.permute.xlu0 %118
    %v120 = vlaneseq
    %v121 = vshrl.u32 %v120, 7
    %v122 = vsub.s32 1, %v121
    %v123 = vrot.slane %v54, %v122
    %125 = vbcast.lane.b32.xlu0 %v123, 256
    %v126 = vpop.permute.xlu0 %125
    %v127 = vlaneseq
    %v128 = vshrl.u32 %v127, 7
    %v129 = vsub.s32 2, %v128
    %v130 = vrot.slane %v54, %v129
    %132 = vbcast.lane.b32.xlu0 %v130, 256
    %v133 = vpop.permute.xlu0 %132
    %v134 = vlaneseq
    %v135 = vshrl.u32 %v134, 7
    %v136 = vsub.s32 3, %v135
    %v137 = vrot.slane %v54, %v136
    %139 = vbcast.lane.b32.xlu0 %v137, 256
    %v140 = vpop.permute.xlu0 %139
    %v141 = vlaneseq
    %v142 = vshrl.u32 %v141, 7
    %v143 = vsub.s32 4, %v142
    %v144 = vrot.slane %v54, %v143
    %146 = vbcast.lane.b32.xlu0 %v144, 256
    %v147 = vpop.permute.xlu0 %146
    %v148 = vlaneseq
    %v149 = vshrl.u32 %v148, 7
    %v150 = vsub.s32 5, %v149
    %v151 = vrot.slane %v54, %v150
    %153 = vbcast.lane.b32.xlu0 %v151, 256
    %v154 = vpop.permute.xlu0 %153
    %v155 = vlaneseq
    %v156 = vshrl.u32 %v155, 7
    %v157 = vsub.s32 6, %v156
    %v158 = vrot.slane %v54, %v157
    %160 = vbcast.lane.b32.xlu0 %v158, 256
    %v161 = vpop.permute.xlu0 %160
    %v162 = vlaneseq
    %v163 = vshrl.u32 %v162, 7
    %v164 = vsub.s32 7, %v163
    %v165 = vrot.slane %v54, %v164
    %167 = vbcast.lane.b32.xlu0 %v165, 256
    %v168 = vpop.permute.xlu0 %167
    %vm169 = vcmp.eq.s32.totalorder %v63, %v56
    %vm170 = vcmp.eq.s32.totalorder %v70, %v56
    %vm171 = vcmp.eq.s32.totalorder %v77, %v56
    %vm172 = vcmp.eq.s32.totalorder %v84, %v56
    %vm173 = vcmp.eq.s32.totalorder %v91, %v56
    %vm174 = vcmp.eq.s32.totalorder %v98, %v56
    %vm175 = vcmp.eq.s32.totalorder %v105, %v56
    %vm176 = vcmp.eq.s32.totalorder %v112, %v56
    %vm177 = vcmp.eq.s32.totalorder %v119, %v56
    %vm178 = vcmp.eq.s32.totalorder %v126, %v56
    %vm179 = vcmp.eq.s32.totalorder %v133, %v56
    %vm180 = vcmp.eq.s32.totalorder %v140, %v56
    %vm181 = vcmp.eq.s32.totalorder %v147, %v56
    %vm182 = vcmp.eq.s32.totalorder %v154, %v56
    %vm183 = vcmp.eq.s32.totalorder %v161, %v56
    %vm184 = vcmp.eq.s32.totalorder %v168, %v56
    %v185 = vsel %vm169, 1, 0
    %v186 = vsel %vm170, 1, 0
    %v187 = vsel %vm171, 1, 0
    %v188 = vsel %vm172, 1, 0
    %v189 = vsel %vm173, 1, 0
    %v190 = vsel %vm174, 1, 0
    %v191 = vsel %vm175, 1, 0
    %v192 = vsel %vm176, 1, 0
    %v193 = vsel %vm177, 1, 0
    %v194 = vsel %vm178, 1, 0
    %v195 = vsel %vm179, 1, 0
    %v196 = vsel %vm180, 1, 0
    %v197 = vsel %vm181, 1, 0
    %v198 = vsel %vm182, 1, 0
    %v199 = vsel %vm183, 1, 0
    %v200 = vsel %vm184, 1, 0
    %v201 = vcvt.s32.f32 %v185
    %v202 = vcvt.s32.f32 %v186
    %v203 = vcvt.s32.f32 %v187
    %v204 = vcvt.s32.f32 %v188
    %v205 = vcvt.s32.f32 %v189
    %v206 = vcvt.s32.f32 %v190
    %v207 = vcvt.s32.f32 %v191
    %v208 = vcvt.s32.f32 %v192
    %v209 = vcvt.s32.f32 %v193
    %v210 = vcvt.s32.f32 %v194
    %v211 = vcvt.s32.f32 %v195
    %v212 = vcvt.s32.f32 %v196
    %v213 = vcvt.s32.f32 %v197
    %v214 = vcvt.s32.f32 %v198
    %v215 = vcvt.s32.f32 %v199
    %v216 = vcvt.s32.f32 %v200
    %vm217 = vcmask 392192
    %v218 = vsel %vm217, %v201, 0.0
    %v219 = vrot.slane %v218, 4
    %v220 = vadd.f32 %v218, %v219
    %v221 = vrot.slane %v220, 2
    %v222 = vadd.f32 %v220, %v221
    %v223 = vrot.slane %v222, 1
    %v224 = vadd.f32 %v222, %v223
    %v225 = vsel %vm217, %v202, 0.0
    %v226 = vrot.slane %v225, 4
    %v227 = vadd.f32 %v225, %v226
    %v228 = vrot.slane %v227, 2
    %v229 = vadd.f32 %v227, %v228
    %v230 = vrot.slane %v229, 1
    %v231 = vadd.f32 %v229, %v230
    %v232 = vsel %vm217, %v203, 0.0
    %v233 = vrot.slane %v232, 4
    %v234 = vadd.f32 %v232, %v233
    %v235 = vrot.slane %v234, 2
    %v236 = vadd.f32 %v234, %v235
    %v237 = vrot.slane %v236, 1
    %v238 = vadd.f32 %v236, %v237
    %v239 = vsel %vm217, %v204, 0.0
    %v240 = vrot.slane %v239, 4
    %v241 = vadd.f32 %v239, %v240
    %v242 = vrot.slane %v241, 2
    %v243 = vadd.f32 %v241, %v242
    %v244 = vrot.slane %v243, 1
    %v245 = vadd.f32 %v243, %v244
    %v246 = vsel %vm217, %v205, 0.0
    %v247 = vrot.slane %v246, 4
    %v248 = vadd.f32 %v246, %v247
    %v249 = vrot.slane %v248, 2
    %v250 = vadd.f32 %v248, %v249
    %v251 = vrot.slane %v250, 1
    %v252 = vadd.f32 %v250, %v251
    %v253 = vsel %vm217, %v206, 0.0
    %v254 = vrot.slane %v253, 4
    %v255 = vadd.f32 %v253, %v254
    %v256 = vrot.slane %v255, 2
    %v257 = vadd.f32 %v255, %v256
    %v258 = vrot.slane %v257, 1
    %v259 = vadd.f32 %v257, %v258
    %v260 = vsel %vm217, %v207, 0.0
    %v261 = vrot.slane %v260, 4
    %v262 = vadd.f32 %v260, %v261
    %v263 = vrot.slane %v262, 2
    %v264 = vadd.f32 %v262, %v263
    %v265 = vrot.slane %v264, 1
    %v266 = vadd.f32 %v264, %v265
    %v267 = vsel %vm217, %v208, 0.0
    %v268 = vrot.slane %v267, 4
    %v269 = vadd.f32 %v267, %v268
    %v270 = vrot.slane %v269, 2
    %v271 = vadd.f32 %v269, %v270
    %v272 = vrot.slane %v271, 1
    %v273 = vadd.f32 %v271, %v272
    %v274 = vsel %vm217, %v209, 0.0
    %v275 = vrot.slane %v274, 4
    %v276 = vadd.f32 %v274, %v275
    %v277 = vrot.slane %v276, 2
    %v278 = vadd.f32 %v276, %v277
    %v279 = vrot.slane %v278, 1
    %v280 = vadd.f32 %v278, %v279
    %v281 = vsel %vm217, %v210, 0.0
    %v282 = vrot.slane %v281, 4
    %v283 = vadd.f32 %v281, %v282
    %v284 = vrot.slane %v283, 2
    %v285 = vadd.f32 %v283, %v284
    %v286 = vrot.slane %v285, 1
    %v287 = vadd.f32 %v285, %v286
    %v288 = vsel %vm217, %v211, 0.0
    %v289 = vrot.slane %v288, 4
    %v290 = vadd.f32 %v288, %v289
    %v291 = vrot.slane %v290, 2
    %v292 = vadd.f32 %v290, %v291
    %v293 = vrot.slane %v292, 1
    %v294 = vadd.f32 %v292, %v293
    %v295 = vsel %vm217, %v212, 0.0
    %v296 = vrot.slane %v295, 4
    %v297 = vadd.f32 %v295, %v296
    %v298 = vrot.slane %v297, 2
    %v299 = vadd.f32 %v297, %v298
    %v300 = vrot.slane %v299, 1
    %v301 = vadd.f32 %v299, %v300
    %v302 = vsel %vm217, %v213, 0.0
    %v303 = vrot.slane %v302, 4
    %v304 = vadd.f32 %v302, %v303
    %v305 = vrot.slane %v304, 2
    %v306 = vadd.f32 %v304, %v305
    %v307 = vrot.slane %v306, 1
    %v308 = vadd.f32 %v306, %v307
    %v309 = vsel %vm217, %v214, 0.0
    %v310 = vrot.slane %v309, 4
    %v311 = vadd.f32 %v309, %v310
    %v312 = vrot.slane %v311, 2
    %v313 = vadd.f32 %v311, %v312
    %v314 = vrot.slane %v313, 1
    %v315 = vadd.f32 %v313, %v314
    %v316 = vsel %vm217, %v215, 0.0
    %v317 = vrot.slane %v316, 4
    %v318 = vadd.f32 %v316, %v317
    %v319 = vrot.slane %v318, 2
    %v320 = vadd.f32 %v318, %v319
    %v321 = vrot.slane %v320, 1
    %v322 = vadd.f32 %v320, %v321
    %v323 = vsel %vm217, %v216, 0.0
    %v324 = vrot.slane %v323, 4
    %v325 = vadd.f32 %v323, %v324
    %v326 = vrot.slane %v325, 2
    %v327 = vadd.f32 %v325, %v326
    %v328 = vrot.slane %v327, 1
    %v329 = vadd.f32 %v327, %v328
    %v330 = vld [vmem:[#allocation2] sm:$0xff]
    %v331 = vld [vmem:[#allocation2 + $0x8] sm:$0xff]
    %v332 = vld [vmem:[#allocation3] sm:$0xff]
    %v333 = vld [vmem:[#allocation3 + $0x8] sm:$0xff]
    %v334 = vld [vmem:[#allocation3 + $0x10] sm:$0xff]
    %v335 = vld [vmem:[#allocation3 + $0x18] sm:$0xff]
    %v336 = vld [vmem:[#allocation3 + $0x20] sm:$0xff]
    %v337 = vld [vmem:[#allocation3 + $0x28] sm:$0xff]
    %vm354 = vcmask 1041409
    %v355 = vsel %vm354, %v231, %v224
    %vm356 = vcmask 1042434
    %v357 = vsel %vm356, %v238, %v355
    %vm358 = vcmask 1043459
    %v359 = vsel %vm358, %v245, %v357
    %vm360 = vcmask 1044484
    %v361 = vsel %vm360, %v252, %v359
    %vm362 = vcmask 1045509
    %v363 = vsel %vm362, %v259, %v361
    %vm364 = vcmask 1046534
    %v365 = vsel %vm364, %v266, %v363
    %vm366 = vcmask 1047559
    %v367 = vsel %vm366, %v273, %v365
    %v368 = vsel %vm354, %v287, %v280
    %v369 = vsel %vm356, %v294, %v368
    %v370 = vsel %vm358, %v301, %v369
    %v371 = vsel %vm360, %v308, %v370
    %v372 = vsel %vm362, %v315, %v371
    %v373 = vsel %vm364, %v322, %v372
    %v374 = vsel %vm366, %v329, %v373
    %v375 = vsel %vm217, %v367, 0
    %v377 = vsel %vm217, %v374, 0
    %379 = vmatprep.subr.mxu0 0.0
    %380 = vmatpush1.msra.mxu0 0.0
    %381 = vmatprep.subr.mxu0 0.0
    %382 = vmatpush1.msra.mxu0 0.0
    %383 = vmatprep.subr.mxu0 0.0
    %384 = vmatpush1.msra.mxu0 0.0
    %385 = vmatprep.subr.mxu0 0.0
    %386 = vmatpush1.msra.mxu0 0.0
    %387 = vmatprep.subr.mxu0 0.0
    %388 = vmatpush1.msra.mxu0 0.0
    %389 = vmatprep.subr.mxu0 0.0
    %390 = vmatpush1.msra.mxu0 0.0
    %391 = vmatprep.subr.mxu0 0.0
    %392 = vmatpush1.msra.mxu0 0.0
    %393 = vmatprep.subr.mxu0 0.0
    %394 = vmatpush1.msra.mxu0 0.0
    %395 = vmatprep.subr.mxu0 0.0
    %396 = vmatpush1.msra.mxu0 0.0
    %397 = vmatprep.subr.mxu0 0.0
    %398 = vmatpush1.msra.mxu0 0.0
    %399 = vmatprep.subr.mxu0 0.0
    %400 = vmatpush1.msra.mxu0 %v337
    %401 = vmatprep.subr.mxu0 0.0
    %402 = vmatpush1.msra.mxu0 %v336
    %403 = vmatprep.subr.mxu0 0.0
    %404 = vmatpush1.msra.mxu0 %v335
    %405 = vmatprep.subr.mxu0 0.0
    %406 = vmatpush1.msra.mxu0 %v334
    %407 = vmatprep.subr.mxu0 0.0
    %408 = vmatpush1.msra.mxu0 %v333
    %409 = vmatprep.subr.mxu0 0.0
    %410 = vmatpush1.msra.mxu0 %v332
    %411 = vmatprep.subr.mxu0 0.0
    %412 = vmatpush2.msra.mxu0 0.0
    %413 = vmatprep.subr.mxu0 0.0
    %414 = vmatpush2.msra.mxu0 0.0
    %415 = vmatprep.subr.mxu0 0.0
    %416 = vmatpush2.msra.mxu0 0.0
    %417 = vmatprep.subr.mxu0 0.0
    %418 = vmatpush2.msra.mxu0 0.0
    %419 = vmatprep.subr.mxu0 0.0
    %420 = vmatpush2.msra.mxu0 0.0
    %421 = vmatprep.subr.mxu0 0.0
    %422 = vmatpush2.msra.mxu0 0.0
    %423 = vmatprep.subr.mxu0 0.0
    %424 = vmatpush2.msra.mxu0 0.0
    %425 = vmatprep.subr.mxu0 0.0
    %426 = vmatpush2.msra.mxu0 0.0
    %427 = vmatprep.subr.mxu0 0.0
    %428 = vmatpush2.msra.mxu0 0.0
    %429 = vmatprep.subr.mxu0 0.0
    %430 = vmatpush2.msra.mxu0 0.0
    %431 = vmatprep.subr.mxu0 0.0
    %432 = vmatpush2.msra.mxu0 0.0
    %433 = vmatprep.subr.mxu0 0.0
    %434 = vmatpush2.msra.mxu0 0.0
    %435 = vmatprep.subr.mxu0 0.0
    %436 = vmatpush2.msra.mxu0 0.0
    %437 = vmatprep.subr.mxu0 0.0
    %438 = vmatpush2.msra.mxu0 0.0
    %439 = vmatprep.subr.mxu0 0.0
    %440 = vmatpush2.msra.mxu0 0.0
    %441 = vmatprep.subr.mxu0 0.0
    %442 = vmatpush2.msra.mxu0 0.0
    %443 = vmatprep.mubr.f32.mxu0 0.0
    %444 = vmatmul.mubr.f32.gmra.mxu0 %v375
    %v445 = vpop.f32.mrf.mxu0
    %v446 = vadd.f32 0.0, %v445
    %v447 = vpop.f32.mrf.mxu0
    %448 = vmatprep.mubr.f32.mxu0 0.0
    %449 = vmatmul.mubr.f32.gmra.mxu0 %v377
    %v450 = vpop.f32.mrf.mxu0
    %v451 = vadd.f32 0.0, %v450
    %v452 = vpop.f32.mrf.mxu0
    %453 = vdwg.mxu0
    %v454 = vadd.f32 %v330, %v446
    %v455 = vadd.f32 %v331, %v451
    %456 = vst [vmem:[#allocation2] sm:$0xff] %v454
    %457 = vst [vmem:[#allocation2 + $0x8] sm:$0xff] %v455
    // Predicated region
    $region30: #{tpu_custom_call.1} parent=1 // pred_check
      %p458 = pneg %p47
    $region31: #{tpu_custom_call.1} parent=1 // pred_check_branch
      %460 = sbr.rel (%p458) target = $region33
    $region32: #{tpu_custom_call.1} parent=1 // pred_region
      %v461 = vld [vmem:[#allocation2] sm:$0xff]
      %v462 = vld [vmem:[#allocation2 + $0x8] sm:$0xff]
      %v463 = vld [vmem:[#allocation6] sm:$0xf]
      %v464 = vld [vmem:[#allocation6 + $0x4] sm:$0xf]
      %v465 = vld [vmem:[#allocation6 + $0x8] sm:$0xf]
      %v466 = vld [vmem:[#allocation6 + $0xc] sm:$0xf]
      %v467 = vld [vmem:[#allocation6 + $0x10] sm:$0xf]
      %v468 = vld [vmem:[#allocation6 + $0x14] sm:$0xf]
      %v469 = vld [vmem:[#allocation6 + $0x18] sm:$0xf]
      %v470 = vld [vmem:[#allocation6 + $0x1c] sm:$0xf]
      %v471 = vld [vmem:[#allocation6 + $0x20] sm:$0xf]
      %v472 = vld [vmem:[#allocation6 + $0x24] sm:$0xf]
      %v473 = vld [vmem:[#allocation6 + $0x28] sm:$0xf]
      %v474 = vld [vmem:[#allocation6 + $0x2c] sm:$0xf]
      %v475 = vld [vmem:[#allocation6 + $0x30] sm:$0xf]
      %v476 = vld [vmem:[#allocation6 + $0x34] sm:$0xf]
      %v477 = vld [vmem:[#allocation6 + $0x38] sm:$0xf]
      %v478 = vld [vmem:[#allocation6 + $0x3c] sm:$0xf]
      %v479 = vld [vmem:[%s3] sm:$0x1]
      %v480 = vmul.f32 %v461, 0.125
      %v481 = vmul.f32 %v462, 0.125
      %v482 = vpack.c.bf16 %v481, %v480
      %v484 = vlaneseq
      %v485 = vshrl.u32 %v484, 7
      %v486 = vsub.s32 0, %v485
      %v487 = vrot.slane %v479, %v486
      %v505 = vunpack.c.l.b16 %v463
      %v506 = vunpack.c.l.b16 %v464
      %v507 = vunpack.c.l.b16 %v465
      %v508 = vunpack.c.l.b16 %v466
      %v509 = vunpack.c.l.b16 %v467
      %v510 = vunpack.c.l.b16 %v468
      %v511 = vunpack.c.l.b16 %v469
      %v512 = vunpack.c.l.b16 %v470
      %v513 = vunpack.c.l.b16 %v471
      %v514 = vunpack.c.l.b16 %v472
      %v515 = vunpack.c.l.b16 %v473
      %v516 = vunpack.c.l.b16 %v474
      %v517 = vunpack.c.l.b16 %v475
      %v518 = vunpack.c.l.b16 %v476
      %v519 = vunpack.c.l.b16 %v477
      %v520 = vunpack.c.l.b16 %v478
      %v521 = vpack.c.b16 %v506, %v505
      %v522 = vpack.c.b16 %v508, %v507
      %v523 = vpack.c.b16 %v510, %v509
      %v524 = vpack.c.b16 %v512, %v511
      %v525 = vpack.c.b16 %v514, %v513
      %v526 = vpack.c.b16 %v516, %v515
      %v527 = vpack.c.b16 %v518, %v517
      %v528 = vpack.c.b16 %v520, %v519
      %537 = vmatprep.subr.bf16.mxu0 0
      %538 = vmatpush1.bf16.msra.mxu0 %v528
      %539 = vmatprep.subr.bf16.mxu0 0
      %540 = vmatpush1.bf16.msra.mxu0 %v527
      %541 = vmatprep.subr.bf16.mxu0 0
      %542 = vmatpush1.bf16.msra.mxu0 %v526
      %543 = vmatprep.subr.bf16.mxu0 0
      %544 = vmatpush1.bf16.msra.mxu0 %v525
      %545 = vmatprep.subr.bf16.mxu0 0
      %546 = vmatpush1.bf16.msra.mxu0 %v524
      %547 = vmatprep.subr.bf16.mxu0 0
      %548 = vmatpush1.bf16.msra.mxu0 %v523
      %549 = vmatprep.subr.bf16.mxu0 0
      %550 = vmatpush1.bf16.msra.mxu0 %v522
      %551 = vmatprep.subr.bf16.mxu0 0
      %552 = vmatpush1.bf16.msra.mxu0 %v521
      %553 = vmatprep.subr.bf16.mxu0 0
      %554 = vmatpush2.bf16.msra.mxu0 0
      %555 = vmatprep.subr.bf16.mxu0 0
      %556 = vmatpush2.bf16.msra.mxu0 0
      %557 = vmatprep.subr.bf16.mxu0 0
      %558 = vmatpush2.bf16.msra.mxu0 0
      %559 = vmatprep.subr.bf16.mxu0 0
      %560 = vmatpush2.bf16.msra.mxu0 0
      %561 = vmatprep.subr.bf16.mxu0 0
      %562 = vmatpush2.bf16.msra.mxu0 0
      %563 = vmatprep.subr.bf16.mxu0 0
      %564 = vmatpush2.bf16.msra.mxu0 0
      %565 = vmatprep.subr.bf16.mxu0 0
      %566 = vmatpush2.bf16.msra.mxu0 0
      %567 = vmatprep.subr.bf16.mxu0 0
      %568 = vmatpush2.bf16.msra.mxu0 0
      %569 = vmatprep.mubr.bf16.mxu0 0
      %570 = vmatmul.mubr.bf16.gmra.mxu0 %v482
      %v571 = vpop.f32.mrf.mxu0
      %v572 = vadd.f32 %v487, %v571
      %v573 = vpop.f32.mrf.mxu0
      %v574 = vpop.f32.mrf.mxu0
      %v575 = vadd.f32 %v487, %v574
      %v576 = vpop.f32.mrf.mxu0
      %577 = vdwg.mxu0
      %v578 = vtanh.pop %v572
      %v579 = vtanh.pop %v575
      %v580 = vmul.f32 %v578, %v578
      %v581 = vmul.f32 %v579, %v579
      %582 = vadd.xlane.f32.xlu0 %v580
      %v583 = vpop.xlane.xlu0 %582
      %584 = vadd.xlane.f32.xlu0 %v581
      %v585 = vpop.xlane.xlu0 %584
      %v586 = vmax.f32 %v583, 1e-24
      %v587 = vmax.f32 %v585, 1e-24
      %v588 = vrsqrt.pop %v586
      %v589 = vrsqrt.pop %v587
      %v590 = vmul.f32 %v578, %v588
      %v591 = vmul.f32 %v579, %v589
      %592 = vst [vmem:[#allocation8] sm:$0xff] %v590
      %593 = vst [vmem:[#allocation8 + $0x8] sm:$0xff] %v591
    $region33: #{tpu_custom_call.1} parent=1 // pred_fallthru
      _
    // Predicated region
    $region34: #{tpu_custom_call.1} parent=1 // pred_check
      _
    $region35: #{tpu_custom_call.1} parent=1 // pred_check_branch
      %595 = sbr.rel (0) target = $region37
    $region36: #{tpu_custom_call.1} parent=1 // pred_region
      %s597 = ssub.s32 256, 256
      %598 = vsyncadd [#allocation5], %s597
      %s599 = sshll.u32 [#allocation8], 4
      %s600 = int_to_ptr.vmem [resolvable:$true] %s599
      %605 = dma.vmem_to_hbm [thread:$0]  %s600, 256, %s4, [#allocation5], 128, 128, 8
    $region37: #{tpu_custom_call.1} parent=1 // pred_fallthru
      _
    // Predicated region
    $region38: #{tpu_custom_call.1} parent=1 // pred_check
      _
    $region39: #{tpu_custom_call.1} parent=1 // pred_check_branch
      %607 = sbr.rel (0) target = $region41
    $region40: #{tpu_custom_call.1} parent=1 // pred_region
      %608 = dma.done [#allocation5], 256
    $region41: #{tpu_custom_call.1} parent=1 // pred_fallthru
      _
    %609 = vsyncpa [#allocation4], 1
    %610 = vsyncpa [#allocation7], 1
    %611 = vsyncpa [#allocation5], 1

</llo_original>
